<compile_context>
chip_gen: v7x
topology: tpu7x:2x2x1
jax: 0.10.0
libtpu: 0.0.40
codegen_flags: <defaults>
</compile_context>

<pallas_src>
import math
import functools

import jax
import jax.numpy as jnp
from jax.experimental import pallas as pl
from jax.experimental.pallas import tpu as pltpu


def _grouped_conv_kernel(x_ref, w_ref, o_ref, pad_ref, *, K, stride, ph, pw,
                         H, W, H_out, W_out, cin_pg, out_pg, group):
    """Compute all OC output channels of one batch element.

    x_ref:   (1, C, H, W)            VMEM  -- unpadded input block for batch n
    w_ref:   (OC * cin_pg * K * K,)  SMEM  -- all weights, flat, scalar reads
    o_ref:   (1, OC, H_out, W_out)   VMEM
    pad_ref: (C, H_pad, W_pad)       VMEM scratch -- zero-padded input planes
    """
    # --- fold zero-padding into the kernel -------------------------------
    # Zero the padded scratch every step (scratch is per-core; do NOT gate on
    # program_id==0, that step may run on only one TensorCore), then write the
    # unpadded block into its interior.
    pad_ref[...] = jnp.zeros_like(pad_ref)
    pad_ref[:, ph:ph + H, pw:pw + W] = x_ref[0].astype(jnp.float32)

    h_span = (H_out - 1) * stride + 1
    w_span = (W_out - 1) * stride + 1

    accs = []  # one f32 (H_out, W_out) accumulator per global output channel
    for g in range(group):                       # static Python loop
        w_base = g * out_pg * cin_pg * K * K     # static -> static SMEM offsets
        g_accs = [jnp.zeros((H_out, W_out), jnp.float32) for _ in range(out_pg)]
        for c in range(cin_pg):
            xc = pad_ref[g * cin_pg + c]         # (H_pad, W_pad) f32, static index
            # Hoist the kw lane-offset slice out of the tap loop: K lane-shifted
            # column views per channel instead of K*K.
            # TODO(synk): stride>1 strided vreg slices are untested on Mosaic;
            # this demo (and the original test) uses stride=1.
            cols = [xc[:, kw:kw + w_span:stride] for kw in range(K)]
            for kh in range(K):
                for kw in range(K):
                    patch = cols[kw][kh:kh + h_span:stride]   # (H_out, W_out)
                    for oc in range(out_pg):
                        widx = w_base + (oc * cin_pg + c) * (K * K) + kh * K + kw
                        g_accs[oc] = g_accs[oc] + patch * w_ref[widx]
        accs.extend(g_accs)

    # Single coalesced block store of all OC output channels.
    o_ref[0] = jnp.stack(accs, axis=0).astype(o_ref.dtype)


class ConvGroupTestPallas:
    """JAX/Pallas port of ConvGroupTest (grouped/depthwise split conv)."""

    def __init__(self, in_channels, out_channels, kernel, stride=1, group=1,
                 bn=True, key=None):
        assert len(set(kernel)) == 2, "must have two different kernel size"
        mink, maxk = min(kernel), max(kernel)
        self.kernels = tuple(kernel)
        self.stride = stride
        if (mink, maxk) == tuple(kernel):
            self.VH = "H"
            self.padding = (mink // 2, mink - 1)        # per-side (pad_h, pad_w)
        else:
            self.VH = "V"
            self.padding = (mink - 1, mink // 2)
        self.nk = math.ceil(maxk / mink)
        self.K = mink
        self.group = group
        self.in_channels = in_channels
        self.out_channels_total = out_channels * self.nk
        assert in_channels % group == 0 and self.out_channels_total % group == 0
        self.cin_pg = in_channels // group              # input channels per group
        self.out_pg = self.out_channels_total // group  # output channels per group

        # Deterministic init mimicking PyTorch Conv2d default (kaiming-uniform bound).
        key = jax.random.PRNGKey(0) if key is None else key
        fan_in = self.cin_pg * self.K * self.K
        bound = 1.0 / math.sqrt(fan_in)
        self.weight = jax.random.uniform(
            key, (self.out_channels_total, self.cin_pg, self.K, self.K),
            dtype=jnp.float32, minval=-bound, maxval=bound)
        # TODO(synk): `bn` flag is accepted but unused in the reference module; nothing to port.

    def __call__(self, x):
        N, C, H, W = x.shape
        assert C == self.in_channels
        ph, pw = self.padding
        H_pad, W_pad = H + 2 * ph, W + 2 * pw
        H_out = (H_pad - self.K) // self.stride + 1
        W_out = (W_pad - self.K) // self.stride + 1
        OC = self.out_channels_total

        # Flatten weights (OC, cin_pg, K, K) -> 1D for resident SMEM scalar reads.
        # TODO(synk): fine at 72 floats; larger configs should move weights to VMEM.
        w_flat = self.weight.reshape(-1)

        kern = functools.partial(
            _grouped_conv_kernel,
            K=self.K, stride=self.stride, ph=ph, pw=pw, H=H, W=W,
            H_out=H_out, W_out=W_out,
            cin_pg=self.cin_pg, out_pg=self.out_pg, group=self.group)

        return pl.pallas_call(
            kern,
            out_shape=jax.ShapeDtypeStruct((N, OC, H_out, W_out), x.dtype),
            grid=(N,),
            in_specs=[
                # whole unpadded input slab of one batch element
                # (last two block dims == full array extents -> valid layout)
                pl.BlockSpec((1, C, H, W), lambda n: (n, 0, 0, 0)),
                # all weights, resident in SMEM for the whole grid
                pl.BlockSpec(memory_space=pltpu.MemorySpace.SMEM),
            ],
            out_specs=pl.BlockSpec((1, OC, H_out, W_out),
                                   lambda n: (n, 0, 0, 0)),
            scratch_shapes=[
                # zero-padded input planes (padding folded into the kernel)
                pltpu.VMEM((C, H_pad, W_pad), jnp.float32),
            ],
            compiler_params=pltpu.CompilerParams(
                dimension_semantics=("parallel",)),
        )(x, w_flat)


if __name__ == "__main__":
    key = jax.random.PRNGKey(0)
    kx, kw = jax.random.split(key)

    # Depthwise-style config: kernel=(3,5) -> mink=3, pad=(1,2), nk=2 -> 8 output channels.
    in_channels, out_channels, group = 4, 4, 4
    mod = ConvGroupTestPallas(in_channels, out_channels, kernel=(3, 5),
                              stride=1, group=group, key=kw)

    x = jax.random.normal(kx, (2, in_channels, 16, 16), dtype=jnp.float32)

    out = mod(x)
    out = jax.block_until_ready(out)

    # Reference check against XLA's grouped conv (same semantics as nn.Conv2d).
    ph, pw = mod.padding
    ref = jax.lax.conv_general_dilated(
        x, mod.weight,
        window_strides=(mod.stride, mod.stride),
        padding=((ph, ph), (pw, pw)),
        dimension_numbers=("NCHW", "OIHW", "NCHW"),
        feature_group_count=group)
    assert out.shape == ref.shape, (out.shape, ref.shape)
    assert jnp.allclose(out, ref, atol=1e-5, rtol=1e-5), float(jnp.max(jnp.abs(out - ref)))

    print("KERNEL_OK")
</pallas_src>

<mosaic_0001>
module attributes {stable_mosaic.version = 11 : i64} {
  func.func @_grouped_conv_kernel(%arg0: i32, %arg1: memref<1x4x16x16xf32, #tpu.memory_space<vmem>>, %arg2: memref<72xf32, #tpu.memory_space<smem>>, %arg3: memref<1x8x16x18xf32, #tpu.memory_space<vmem>>, %arg4: memref<4x18x20xf32, #tpu.memory_space<vmem>>) attributes {dimension_semantics = [#tpu.dimension_semantics<parallel>], iteration_bounds = array<i64: 2>, scalar_prefetch = 0 : i64, scratch_operands = 1 : i64, tpu.core_type = #tpu.core_type<tc>, window_params = [{transform_indices = @transform_0, window_bounds = array<i64: 1, 4, 16, 16>}, {transform_indices = @transform_1, window_bounds = array<i64: 72>}, {transform_indices = @transform_2, window_bounds = array<i64: 1, 8, 16, 18>}]} {
    %cst = arith.constant 0.000000e+00 : f32
    %0 = vector.broadcast %cst : f32 to vector<4x18x20xf32>
    %c0 = arith.constant 0 : index
    %c0_0 = arith.constant 0 : index
    %c0_1 = arith.constant 0 : index
    %1 = vector.load %arg4[%c0, %c0_0, %c0_1] : memref<4x18x20xf32, #tpu.memory_space<vmem>>, vector<4x18x20xf32>
    tpu.vector_store %arg4[%c0, %c0_0, %c0_1], %0 {strides = array<i32>} : memref<4x18x20xf32, #tpu.memory_space<vmem>>, vector<4x18x20xf32>,
    %c0_2 = arith.constant 0 : index
    %c0_3 = arith.constant 0 : index
    %c0_4 = arith.constant 0 : index
    %c0_5 = arith.constant 0 : index
    %2 = vector.load %arg1[%c0_2, %c0_3, %c0_4, %c0_5] : memref<1x4x16x16xf32, #tpu.memory_space<vmem>>, vector<1x4x16x16xf32>
    %3 = vector.shape_cast %2 : vector<1x4x16x16xf32> to vector<4x16x16xf32>
    %c0_6 = arith.constant 0 : index
    %c1 = arith.constant 1 : index
    %c2 = arith.constant 2 : index
    %4 = vector.load %arg4[%c0_6, %c1, %c2] : memref<4x18x20xf32, #tpu.memory_space<vmem>>, vector<4x16x16xf32>
    tpu.vector_store %arg4[%c0_6, %c1, %c2], %3 {strides = array<i32>} : memref<4x18x20xf32, #tpu.memory_space<vmem>>, vector<4x16x16xf32>,
    %cst_7 = arith.constant 0.000000e+00 : f32
    %5 = vector.broadcast %cst_7 : f32 to vector<16x18xf32>
    %cst_8 = arith.constant 0.000000e+00 : f32
    %6 = vector.broadcast %cst_8 : f32 to vector<16x18xf32>
    %c0_9 = arith.constant 0 : index
    %c0_10 = arith.constant 0 : index
    %c0_11 = arith.constant 0 : index
    %7 = vector.load %arg4[%c0_9, %c0_10, %c0_11] : memref<4x18x20xf32, #tpu.memory_space<vmem>>, vector<1x18x20xf32>
    %8 = vector.shape_cast %7 : vector<1x18x20xf32> to vector<18x20xf32>
    %9 = vector.extract_strided_slice %8 {offsets = [0, 0], sizes = [18, 18], strides = [1, 1]} : vector<18x20xf32> to vector<18x18xf32>
    %10 = vector.extract_strided_slice %8 {offsets = [0, 1], sizes = [18, 18], strides = [1, 1]} : vector<18x20xf32> to vector<18x18xf32>
    %11 = vector.extract_strided_slice %8 {offsets = [0, 2], sizes = [18, 18], strides = [1, 1]} : vector<18x20xf32> to vector<18x18xf32>
    %12 = vector.extract_strided_slice %9 {offsets = [0, 0], sizes = [16, 18], strides = [1, 1]} : vector<18x18xf32> to vector<16x18xf32>
    %c0_12 = arith.constant 0 : index
    %13 = memref.load %arg2[%c0_12] : memref<72xf32, #tpu.memory_space<smem>>
    %14 = vector.broadcast %13 : f32 to vector<16x18xf32>
    %15 = arith.mulf %12, %14 : vector<16x18xf32>
    %16 = arith.addf %5, %15 : vector<16x18xf32>
    %c9 = arith.constant 9 : index
    %17 = memref.load %arg2[%c9] : memref<72xf32, #tpu.memory_space<smem>>
    %18 = vector.broadcast %17 : f32 to vector<16x18xf32>
    %19 = arith.mulf %12, %18 : vector<16x18xf32>
    %20 = arith.addf %6, %19 : vector<16x18xf32>
    %21 = vector.extract_strided_slice %10 {offsets = [0, 0], sizes = [16, 18], strides = [1, 1]} : vector<18x18xf32> to vector<16x18xf32>
    %c1_13 = arith.constant 1 : index
    %22 = memref.load %arg2[%c1_13] : memref<72xf32, #tpu.memory_space<smem>>
    %23 = vector.broadcast %22 : f32 to vector<16x18xf32>
    %24 = arith.mulf %21, %23 : vector<16x18xf32>
    %25 = arith.addf %16, %24 : vector<16x18xf32>
    %c10 = arith.constant 10 : index
    %26 = memref.load %arg2[%c10] : memref<72xf32, #tpu.memory_space<smem>>
    %27 = vector.broadcast %26 : f32 to vector<16x18xf32>
    %28 = arith.mulf %21, %27 : vector<16x18xf32>
    %29 = arith.addf %20, %28 : vector<16x18xf32>
    %30 = vector.extract_strided_slice %11 {offsets = [0, 0], sizes = [16, 18], strides = [1, 1]} : vector<18x18xf32> to vector<16x18xf32>
    %c2_14 = arith.constant 2 : index
    %31 = memref.load %arg2[%c2_14] : memref<72xf32, #tpu.memory_space<smem>>
    %32 = vector.broadcast %31 : f32 to vector<16x18xf32>
    %33 = arith.mulf %30, %32 : vector<16x18xf32>
    %34 = arith.addf %25, %33 : vector<16x18xf32>
    %c11 = arith.constant 11 : index
    %35 = memref.load %arg2[%c11] : memref<72xf32, #tpu.memory_space<smem>>
    %36 = vector.broadcast %35 : f32 to vector<16x18xf32>
    %37 = arith.mulf %30, %36 : vector<16x18xf32>
    %38 = arith.addf %29, %37 : vector<16x18xf32>
    %39 = vector.extract_strided_slice %9 {offsets = [1, 0], sizes = [16, 18], strides = [1, 1]} : vector<18x18xf32> to vector<16x18xf32>
    %c3 = arith.constant 3 : index
    %40 = memref.load %arg2[%c3] : memref<72xf32, #tpu.memory_space<smem>>
    %41 = vector.broadcast %40 : f32 to vector<16x18xf32>
    %42 = arith.mulf %39, %41 : vector<16x18xf32>
    %43 = arith.addf %34, %42 : vector<16x18xf32>
    %c12 = arith.constant 12 : index
    %44 = memref.load %arg2[%c12] : memref<72xf32, #tpu.memory_space<smem>>
    %45 = vector.broadcast %44 : f32 to vector<16x18xf32>
    %46 = arith.mulf %39, %45 : vector<16x18xf32>
    %47 = arith.addf %38, %46 : vector<16x18xf32>
    %48 = vector.extract_strided_slice %10 {offsets = [1, 0], sizes = [16, 18], strides = [1, 1]} : vector<18x18xf32> to vector<16x18xf32>
    %c4 = arith.constant 4 : index
    %49 = memref.load %arg2[%c4] : memref<72xf32, #tpu.memory_space<smem>>
    %50 = vector.broadcast %49 : f32 to vector<16x18xf32>
    %51 = arith.mulf %48, %50 : vector<16x18xf32>
    %52 = arith.addf %43, %51 : vector<16x18xf32>
    %c13 = arith.constant 13 : index
    %53 = memref.load %arg2[%c13] : memref<72xf32, #tpu.memory_space<smem>>
    %54 = vector.broadcast %53 : f32 to vector<16x18xf32>
    %55 = arith.mulf %48, %54 : vector<16x18xf32>
    %56 = arith.addf %47, %55 : vector<16x18xf32>
    %57 = vector.extract_strided_slice %11 {offsets = [1, 0], sizes = [16, 18], strides = [1, 1]} : vector<18x18xf32> to vector<16x18xf32>
    %c5 = arith.constant 5 : index
    %58 = memref.load %arg2[%c5] : memref<72xf32, #tpu.memory_space<smem>>
    %59 = vector.broadcast %58 : f32 to vector<16x18xf32>
    %60 = arith.mulf %57, %59 : vector<16x18xf32>
    %61 = arith.addf %52, %60 : vector<16x18xf32>
    %c14 = arith.constant 14 : index
    %62 = memref.load %arg2[%c14] : memref<72xf32, #tpu.memory_space<smem>>
    %63 = vector.broadcast %62 : f32 to vector<16x18xf32>
    %64 = arith.mulf %57, %63 : vector<16x18xf32>
    %65 = arith.addf %56, %64 : vector<16x18xf32>
    %66 = vector.extract_strided_slice %9 {offsets = [2, 0], sizes = [16, 18], strides = [1, 1]} : vector<18x18xf32> to vector<16x18xf32>
    %c6 = arith.constant 6 : index
    %67 = memref.load %arg2[%c6] : memref<72xf32, #tpu.memory_space<smem>>
    %68 = vector.broadcast %67 : f32 to vector<16x18xf32>
    %69 = arith.mulf %66, %68 : vector<16x18xf32>
    %70 = arith.addf %61, %69 : vector<16x18xf32>
    %c15 = arith.constant 15 : index
    %71 = memref.load %arg2[%c15] : memref<72xf32, #tpu.memory_space<smem>>
    %72 = vector.broadcast %71 : f32 to vector<16x18xf32>
    %73 = arith.mulf %66, %72 : vector<16x18xf32>
    %74 = arith.addf %65, %73 : vector<16x18xf32>
    %75 = vector.extract_strided_slice %10 {offsets = [2, 0], sizes = [16, 18], strides = [1, 1]} : vector<18x18xf32> to vector<16x18xf32>
    %c7 = arith.constant 7 : index
    %76 = memref.load %arg2[%c7] : memref<72xf32, #tpu.memory_space<smem>>
    %77 = vector.broadcast %76 : f32 to vector<16x18xf32>
    %78 = arith.mulf %75, %77 : vector<16x18xf32>
    %79 = arith.addf %70, %78 : vector<16x18xf32>
    %c16 = arith.constant 16 : index
    %80 = memref.load %arg2[%c16] : memref<72xf32, #tpu.memory_space<smem>>
    %81 = vector.broadcast %80 : f32 to vector<16x18xf32>
    %82 = arith.mulf %75, %81 : vector<16x18xf32>
    %83 = arith.addf %74, %82 : vector<16x18xf32>
    %84 = vector.extract_strided_slice %11 {offsets = [2, 0], sizes = [16, 18], strides = [1, 1]} : vector<18x18xf32> to vector<16x18xf32>
    %c8 = arith.constant 8 : index
    %85 = memref.load %arg2[%c8] : memref<72xf32, #tpu.memory_space<smem>>
    %86 = vector.broadcast %85 : f32 to vector<16x18xf32>
    %87 = arith.mulf %84, %86 : vector<16x18xf32>
    %88 = arith.addf %79, %87 : vector<16x18xf32>
    %c17 = arith.constant 17 : index
    %89 = memref.load %arg2[%c17] : memref<72xf32, #tpu.memory_space<smem>>
    %90 = vector.broadcast %89 : f32 to vector<16x18xf32>
    %91 = arith.mulf %84, %90 : vector<16x18xf32>
    %92 = arith.addf %83, %91 : vector<16x18xf32>
    %cst_15 = arith.constant 0.000000e+00 : f32
    %93 = vector.broadcast %cst_15 : f32 to vector<16x18xf32>
    %cst_16 = arith.constant 0.000000e+00 : f32
    %94 = vector.broadcast %cst_16 : f32 to vector<16x18xf32>
    %c1_17 = arith.constant 1 : index
    %c0_18 = arith.constant 0 : index
    %c0_19 = arith.constant 0 : index
    %95 = vector.load %arg4[%c1_17, %c0_18, %c0_19] : memref<4x18x20xf32, #tpu.memory_space<vmem>>, vector<1x18x20xf32>
    %96 = vector.shape_cast %95 : vector<1x18x20xf32> to vector<18x20xf32>
    %97 = vector.extract_strided_slice %96 {offsets = [0, 0], sizes = [18, 18], strides = [1, 1]} : vector<18x20xf32> to vector<18x18xf32>
    %98 = vector.extract_strided_slice %96 {offsets = [0, 1], sizes = [18, 18], strides = [1, 1]} : vector<18x20xf32> to vector<18x18xf32>
    %99 = vector.extract_strided_slice %96 {offsets = [0, 2], sizes = [18, 18], strides = [1, 1]} : vector<18x20xf32> to vector<18x18xf32>
    %100 = vector.extract_strided_slice %97 {offsets = [0, 0], sizes = [16, 18], strides = [1, 1]} : vector<18x18xf32> to vector<16x18xf32>
    %c18 = arith.constant 18 : index
    %101 = memref.load %arg2[%c18] : memref<72xf32, #tpu.memory_space<smem>>
    %102 = vector.broadcast %101 : f32 to vector<16x18xf32>
    %103 = arith.mulf %100, %102 : vector<16x18xf32>
    %104 = arith.addf %93, %103 : vector<16x18xf32>
    %c27 = arith.constant 27 : index
    %105 = memref.load %arg2[%c27] : memref<72xf32, #tpu.memory_space<smem>>
    %106 = vector.broadcast %105 : f32 to vector<16x18xf32>
    %107 = arith.mulf %100, %106 : vector<16x18xf32>
    %108 = arith.addf %94, %107 : vector<16x18xf32>
    %109 = vector.extract_strided_slice %98 {offsets = [0, 0], sizes = [16, 18], strides = [1, 1]} : vector<18x18xf32> to vector<16x18xf32>
    %c19 = arith.constant 19 : index
    %110 = memref.load %arg2[%c19] : memref<72xf32, #tpu.memory_space<smem>>
    %111 = vector.broadcast %110 : f32 to vector<16x18xf32>
    %112 = arith.mulf %109, %111 : vector<16x18xf32>
    %113 = arith.addf %104, %112 : vector<16x18xf32>
    %c28 = arith.constant 28 : index
    %114 = memref.load %arg2[%c28] : memref<72xf32, #tpu.memory_space<smem>>
    %115 = vector.broadcast %114 : f32 to vector<16x18xf32>
    %116 = arith.mulf %109, %115 : vector<16x18xf32>
    %117 = arith.addf %108, %116 : vector<16x18xf32>
    %118 = vector.extract_strided_slice %99 {offsets = [0, 0], sizes = [16, 18], strides = [1, 1]} : vector<18x18xf32> to vector<16x18xf32>
    %c20 = arith.constant 20 : index
    %119 = memref.load %arg2[%c20] : memref<72xf32, #tpu.memory_space<smem>>
    %120 = vector.broadcast %119 : f32 to vector<16x18xf32>
    %121 = arith.mulf %118, %120 : vector<16x18xf32>
    %122 = arith.addf %113, %121 : vector<16x18xf32>
    %c29 = arith.constant 29 : index
    %123 = memref.load %arg2[%c29] : memref<72xf32, #tpu.memory_space<smem>>
    %124 = vector.broadcast %123 : f32 to vector<16x18xf32>
    %125 = arith.mulf %118, %124 : vector<16x18xf32>
    %126 = arith.addf %117, %125 : vector<16x18xf32>
    %127 = vector.extract_strided_slice %97 {offsets = [1, 0], sizes = [16, 18], strides = [1, 1]} : vector<18x18xf32> to vector<16x18xf32>
    %c21 = arith.constant 21 : index
    %128 = memref.load %arg2[%c21] : memref<72xf32, #tpu.memory_space<smem>>
    %129 = vector.broadcast %128 : f32 to vector<16x18xf32>
    %130 = arith.mulf %127, %129 : vector<16x18xf32>
    %131 = arith.addf %122, %130 : vector<16x18xf32>
    %c30 = arith.constant 30 : index
    %132 = memref.load %arg2[%c30] : memref<72xf32, #tpu.memory_space<smem>>
    %133 = vector.broadcast %132 : f32 to vector<16x18xf32>
    %134 = arith.mulf %127, %133 : vector<16x18xf32>
    %135 = arith.addf %126, %134 : vector<16x18xf32>
    %136 = vector.extract_strided_slice %98 {offsets = [1, 0], sizes = [16, 18], strides = [1, 1]} : vector<18x18xf32> to vector<16x18xf32>
    %c22 = arith.constant 22 : index
    %137 = memref.load %arg2[%c22] : memref<72xf32, #tpu.memory_space<smem>>
    %138 = vector.broadcast %137 : f32 to vector<16x18xf32>
    %139 = arith.mulf %136, %138 : vector<16x18xf32>
    %140 = arith.addf %131, %139 : vector<16x18xf32>
    %c31 = arith.constant 31 : index
    %141 = memref.load %arg2[%c31] : memref<72xf32, #tpu.memory_space<smem>>
    %142 = vector.broadcast %141 : f32 to vector<16x18xf32>
    %143 = arith.mulf %136, %142 : vector<16x18xf32>
    %144 = arith.addf %135, %143 : vector<16x18xf32>
    %145 = vector.extract_strided_slice %99 {offsets = [1, 0], sizes = [16, 18], strides = [1, 1]} : vector<18x18xf32> to vector<16x18xf32>
    %c23 = arith.constant 23 : index
    %146 = memref.load %arg2[%c23] : memref<72xf32, #tpu.memory_space<smem>>
    %147 = vector.broadcast %146 : f32 to vector<16x18xf32>
    %148 = arith.mulf %145, %147 : vector<16x18xf32>
    %149 = arith.addf %140, %148 : vector<16x18xf32>
    %c32 = arith.constant 32 : index
    %150 = memref.load %arg2[%c32] : memref<72xf32, #tpu.memory_space<smem>>
    %151 = vector.broadcast %150 : f32 to vector<16x18xf32>
    %152 = arith.mulf %145, %151 : vector<16x18xf32>
    %153 = arith.addf %144, %152 : vector<16x18xf32>
    %154 = vector.extract_strided_slice %97 {offsets = [2, 0], sizes = [16, 18], strides = [1, 1]} : vector<18x18xf32> to vector<16x18xf32>
    %c24 = arith.constant 24 : index
    %155 = memref.load %arg2[%c24] : memref<72xf32, #tpu.memory_space<smem>>
    %156 = vector.broadcast %155 : f32 to vector<16x18xf32>
    %157 = arith.mulf %154, %156 : vector<16x18xf32>
    %158 = arith.addf %149, %157 : vector<16x18xf32>
    %c33 = arith.constant 33 : index
    %159 = memref.load %arg2[%c33] : memref<72xf32, #tpu.memory_space<smem>>
    %160 = vector.broadcast %159 : f32 to vector<16x18xf32>
    %161 = arith.mulf %154, %160 : vector<16x18xf32>
    %162 = arith.addf %153, %161 : vector<16x18xf32>
    %163 = vector.extract_strided_slice %98 {offsets = [2, 0], sizes = [16, 18], strides = [1, 1]} : vector<18x18xf32> to vector<16x18xf32>
    %c25 = arith.constant 25 : index
    %164 = memref.load %arg2[%c25] : memref<72xf32, #tpu.memory_space<smem>>
    %165 = vector.broadcast %164 : f32 to vector<16x18xf32>
    %166 = arith.mulf %163, %165 : vector<16x18xf32>
    %167 = arith.addf %158, %166 : vector<16x18xf32>
    %c34 = arith.constant 34 : index
    %168 = memref.load %arg2[%c34] : memref<72xf32, #tpu.memory_space<smem>>
    %169 = vector.broadcast %168 : f32 to vector<16x18xf32>
    %170 = arith.mulf %163, %169 : vector<16x18xf32>
    %171 = arith.addf %162, %170 : vector<16x18xf32>
    %172 = vector.extract_strided_slice %99 {offsets = [2, 0], sizes = [16, 18], strides = [1, 1]} : vector<18x18xf32> to vector<16x18xf32>
    %c26 = arith.constant 26 : index
    %173 = memref.load %arg2[%c26] : memref<72xf32, #tpu.memory_space<smem>>
    %174 = vector.broadcast %173 : f32 to vector<16x18xf32>
    %175 = arith.mulf %172, %174 : vector<16x18xf32>
    %176 = arith.addf %167, %175 : vector<16x18xf32>
    %c35 = arith.constant 35 : index
    %177 = memref.load %arg2[%c35] : memref<72xf32, #tpu.memory_space<smem>>
    %178 = vector.broadcast %177 : f32 to vector<16x18xf32>
    %179 = arith.mulf %172, %178 : vector<16x18xf32>
    %180 = arith.addf %171, %179 : vector<16x18xf32>
    %cst_20 = arith.constant 0.000000e+00 : f32
    %181 = vector.broadcast %cst_20 : f32 to vector<16x18xf32>
    %cst_21 = arith.constant 0.000000e+00 : f32
    %182 = vector.broadcast %cst_21 : f32 to vector<16x18xf32>
    %c2_22 = arith.constant 2 : index
    %c0_23 = arith.constant 0 : index
    %c0_24 = arith.constant 0 : index
    %183 = vector.load %arg4[%c2_22, %c0_23, %c0_24] : memref<4x18x20xf32, #tpu.memory_space<vmem>>, vector<1x18x20xf32>
    %184 = vector.shape_cast %183 : vector<1x18x20xf32> to vector<18x20xf32>
    %185 = vector.extract_strided_slice %184 {offsets = [0, 0], sizes = [18, 18], strides = [1, 1]} : vector<18x20xf32> to vector<18x18xf32>
    %186 = vector.extract_strided_slice %184 {offsets = [0, 1], sizes = [18, 18], strides = [1, 1]} : vector<18x20xf32> to vector<18x18xf32>
    %187 = vector.extract_strided_slice %184 {offsets = [0, 2], sizes = [18, 18], strides = [1, 1]} : vector<18x20xf32> to vector<18x18xf32>
    %188 = vector.extract_strided_slice %185 {offsets = [0, 0], sizes = [16, 18], strides = [1, 1]} : vector<18x18xf32> to vector<16x18xf32>
    %c36 = arith.constant 36 : index
    %189 = memref.load %arg2[%c36] : memref<72xf32, #tpu.memory_space<smem>>
    %190 = vector.broadcast %189 : f32 to vector<16x18xf32>
    %191 = arith.mulf %188, %190 : vector<16x18xf32>
    %192 = arith.addf %181, %191 : vector<16x18xf32>
    %c45 = arith.constant 45 : index
    %193 = memref.load %arg2[%c45] : memref<72xf32, #tpu.memory_space<smem>>
    %194 = vector.broadcast %193 : f32 to vector<16x18xf32>
    %195 = arith.mulf %188, %194 : vector<16x18xf32>
    %196 = arith.addf %182, %195 : vector<16x18xf32>
    %197 = vector.extract_strided_slice %186 {offsets = [0, 0], sizes = [16, 18], strides = [1, 1]} : vector<18x18xf32> to vector<16x18xf32>
    %c37 = arith.constant 37 : index
    %198 = memref.load %arg2[%c37] : memref<72xf32, #tpu.memory_space<smem>>
    %199 = vector.broadcast %198 : f32 to vector<16x18xf32>
    %200 = arith.mulf %197, %199 : vector<16x18xf32>
    %201 = arith.addf %192, %200 : vector<16x18xf32>
    %c46 = arith.constant 46 : index
    %202 = memref.load %arg2[%c46] : memref<72xf32, #tpu.memory_space<smem>>
    %203 = vector.broadcast %202 : f32 to vector<16x18xf32>
    %204 = arith.mulf %197, %203 : vector<16x18xf32>
    %205 = arith.addf %196, %204 : vector<16x18xf32>
    %206 = vector.extract_strided_slice %187 {offsets = [0, 0], sizes = [16, 18], strides = [1, 1]} : vector<18x18xf32> to vector<16x18xf32>
    %c38 = arith.constant 38 : index
    %207 = memref.load %arg2[%c38] : memref<72xf32, #tpu.memory_space<smem>>
    %208 = vector.broadcast %207 : f32 to vector<16x18xf32>
    %209 = arith.mulf %206, %208 : vector<16x18xf32>
    %210 = arith.addf %201, %209 : vector<16x18xf32>
    %c47 = arith.constant 47 : index
    %211 = memref.load %arg2[%c47] : memref<72xf32, #tpu.memory_space<smem>>
    %212 = vector.broadcast %211 : f32 to vector<16x18xf32>
    %213 = arith.mulf %206, %212 : vector<16x18xf32>
    %214 = arith.addf %205, %213 : vector<16x18xf32>
    %215 = vector.extract_strided_slice %185 {offsets = [1, 0], sizes = [16, 18], strides = [1, 1]} : vector<18x18xf32> to vector<16x18xf32>
    %c39 = arith.constant 39 : index
    %216 = memref.load %arg2[%c39] : memref<72xf32, #tpu.memory_space<smem>>
    %217 = vector.broadcast %216 : f32 to vector<16x18xf32>
    %218 = arith.mulf %215, %217 : vector<16x18xf32>
    %219 = arith.addf %210, %218 : vector<16x18xf32>
    %c48 = arith.constant 48 : index
    %220 = memref.load %arg2[%c48] : memref<72xf32, #tpu.memory_space<smem>>
    %221 = vector.broadcast %220 : f32 to vector<16x18xf32>
    %222 = arith.mulf %215, %221 : vector<16x18xf32>
    %223 = arith.addf %214, %222 : vector<16x18xf32>
    %224 = vector.extract_strided_slice %186 {offsets = [1, 0], sizes = [16, 18], strides = [1, 1]} : vector<18x18xf32> to vector<16x18xf32>
    %c40 = arith.constant 40 : index
    %225 = memref.load %arg2[%c40] : memref<72xf32, #tpu.memory_space<smem>>
    %226 = vector.broadcast %225 : f32 to vector<16x18xf32>
    %227 = arith.mulf %224, %226 : vector<16x18xf32>
    %228 = arith.addf %219, %227 : vector<16x18xf32>
    %c49 = arith.constant 49 : index
    %229 = memref.load %arg2[%c49] : memref<72xf32, #tpu.memory_space<smem>>
    %230 = vector.broadcast %229 : f32 to vector<16x18xf32>
    %231 = arith.mulf %224, %230 : vector<16x18xf32>
    %232 = arith.addf %223, %231 : vector<16x18xf32>
    %233 = vector.extract_strided_slice %187 {offsets = [1, 0], sizes = [16, 18], strides = [1, 1]} : vector<18x18xf32> to vector<16x18xf32>
    %c41 = arith.constant 41 : index
    %234 = memref.load %arg2[%c41] : memref<72xf32, #tpu.memory_space<smem>>
    %235 = vector.broadcast %234 : f32 to vector<16x18xf32>
    %236 = arith.mulf %233, %235 : vector<16x18xf32>
    %237 = arith.addf %228, %236 : vector<16x18xf32>
    %c50 = arith.constant 50 : index
    %238 = memref.load %arg2[%c50] : memref<72xf32, #tpu.memory_space<smem>>
    %239 = vector.broadcast %238 : f32 to vector<16x18xf32>
    %240 = arith.mulf %233, %239 : vector<16x18xf32>
    %241 = arith.addf %232, %240 : vector<16x18xf32>
    %242 = vector.extract_strided_slice %185 {offsets = [2, 0], sizes = [16, 18], strides = [1, 1]} : vector<18x18xf32> to vector<16x18xf32>
    %c42 = arith.constant 42 : index
    %243 = memref.load %arg2[%c42] : memref<72xf32, #tpu.memory_space<smem>>
    %244 = vector.broadcast %243 : f32 to vector<16x18xf32>
    %245 = arith.mulf %242, %244 : vector<16x18xf32>
    %246 = arith.addf %237, %245 : vector<16x18xf32>
    %c51 = arith.constant 51 : index
    %247 = memref.load %arg2[%c51] : memref<72xf32, #tpu.memory_space<smem>>
    %248 = vector.broadcast %247 : f32 to vector<16x18xf32>
    %249 = arith.mulf %242, %248 : vector<16x18xf32>
    %250 = arith.addf %241, %249 : vector<16x18xf32>
    %251 = vector.extract_strided_slice %186 {offsets = [2, 0], sizes = [16, 18], strides = [1, 1]} : vector<18x18xf32> to vector<16x18xf32>
    %c43 = arith.constant 43 : index
    %252 = memref.load %arg2[%c43] : memref<72xf32, #tpu.memory_space<smem>>
    %253 = vector.broadcast %252 : f32 to vector<16x18xf32>
    %254 = arith.mulf %251, %253 : vector<16x18xf32>
    %255 = arith.addf %246, %254 : vector<16x18xf32>
    %c52 = arith.constant 52 : index
    %256 = memref.load %arg2[%c52] : memref<72xf32, #tpu.memory_space<smem>>
    %257 = vector.broadcast %256 : f32 to vector<16x18xf32>
    %258 = arith.mulf %251, %257 : vector<16x18xf32>
    %259 = arith.addf %250, %258 : vector<16x18xf32>
    %260 = vector.extract_strided_slice %187 {offsets = [2, 0], sizes = [16, 18], strides = [1, 1]} : vector<18x18xf32> to vector<16x18xf32>
    %c44 = arith.constant 44 : index
    %261 = memref.load %arg2[%c44] : memref<72xf32, #tpu.memory_space<smem>>
    %262 = vector.broadcast %261 : f32 to vector<16x18xf32>
    %263 = arith.mulf %260, %262 : vector<16x18xf32>
    %264 = arith.addf %255, %263 : vector<16x18xf32>
    %c53 = arith.constant 53 : index
    %265 = memref.load %arg2[%c53] : memref<72xf32, #tpu.memory_space<smem>>
    %266 = vector.broadcast %265 : f32 to vector<16x18xf32>
    %267 = arith.mulf %260, %266 : vector<16x18xf32>
    %268 = arith.addf %259, %267 : vector<16x18xf32>
    %cst_25 = arith.constant 0.000000e+00 : f32
    %269 = vector.broadcast %cst_25 : f32 to vector<16x18xf32>
    %cst_26 = arith.constant 0.000000e+00 : f32
    %270 = vector.broadcast %cst_26 : f32 to vector<16x18xf32>
    %c3_27 = arith.constant 3 : index
    %c0_28 = arith.constant 0 : index
    %c0_29 = arith.constant 0 : index
    %271 = vector.load %arg4[%c3_27, %c0_28, %c0_29] : memref<4x18x20xf32, #tpu.memory_space<vmem>>, vector<1x18x20xf32>
    %272 = vector.shape_cast %271 : vector<1x18x20xf32> to vector<18x20xf32>
    %273 = vector.extract_strided_slice %272 {offsets = [0, 0], sizes = [18, 18], strides = [1, 1]} : vector<18x20xf32> to vector<18x18xf32>
    %274 = vector.extract_strided_slice %272 {offsets = [0, 1], sizes = [18, 18], strides = [1, 1]} : vector<18x20xf32> to vector<18x18xf32>
    %275 = vector.extract_strided_slice %272 {offsets = [0, 2], sizes = [18, 18], strides = [1, 1]} : vector<18x20xf32> to vector<18x18xf32>
    %276 = vector.extract_strided_slice %273 {offsets = [0, 0], sizes = [16, 18], strides = [1, 1]} : vector<18x18xf32> to vector<16x18xf32>
    %c54 = arith.constant 54 : index
    %277 = memref.load %arg2[%c54] : memref<72xf32, #tpu.memory_space<smem>>
    %278 = vector.broadcast %277 : f32 to vector<16x18xf32>
    %279 = arith.mulf %276, %278 : vector<16x18xf32>
    %280 = arith.addf %269, %279 : vector<16x18xf32>
    %c63 = arith.constant 63 : index
    %281 = memref.load %arg2[%c63] : memref<72xf32, #tpu.memory_space<smem>>
    %282 = vector.broadcast %281 : f32 to vector<16x18xf32>
    %283 = arith.mulf %276, %282 : vector<16x18xf32>
    %284 = arith.addf %270, %283 : vector<16x18xf32>
    %285 = vector.extract_strided_slice %274 {offsets = [0, 0], sizes = [16, 18], strides = [1, 1]} : vector<18x18xf32> to vector<16x18xf32>
    %c55 = arith.constant 55 : index
    %286 = memref.load %arg2[%c55] : memref<72xf32, #tpu.memory_space<smem>>
    %287 = vector.broadcast %286 : f32 to vector<16x18xf32>
    %288 = arith.mulf %285, %287 : vector<16x18xf32>
    %289 = arith.addf %280, %288 : vector<16x18xf32>
    %c64 = arith.constant 64 : index
    %290 = memref.load %arg2[%c64] : memref<72xf32, #tpu.memory_space<smem>>
    %291 = vector.broadcast %290 : f32 to vector<16x18xf32>
    %292 = arith.mulf %285, %291 : vector<16x18xf32>
    %293 = arith.addf %284, %292 : vector<16x18xf32>
    %294 = vector.extract_strided_slice %275 {offsets = [0, 0], sizes = [16, 18], strides = [1, 1]} : vector<18x18xf32> to vector<16x18xf32>
    %c56 = arith.constant 56 : index
    %295 = memref.load %arg2[%c56] : memref<72xf32, #tpu.memory_space<smem>>
    %296 = vector.broadcast %295 : f32 to vector<16x18xf32>
    %297 = arith.mulf %294, %296 : vector<16x18xf32>
    %298 = arith.addf %289, %297 : vector<16x18xf32>
    %c65 = arith.constant 65 : index
    %299 = memref.load %arg2[%c65] : memref<72xf32, #tpu.memory_space<smem>>
    %300 = vector.broadcast %299 : f32 to vector<16x18xf32>
    %301 = arith.mulf %294, %300 : vector<16x18xf32>
    %302 = arith.addf %293, %301 : vector<16x18xf32>
    %303 = vector.extract_strided_slice %273 {offsets = [1, 0], sizes = [16, 18], strides = [1, 1]} : vector<18x18xf32> to vector<16x18xf32>
    %c57 = arith.constant 57 : index
    %304 = memref.load %arg2[%c57] : memref<72xf32, #tpu.memory_space<smem>>
    %305 = vector.broadcast %304 : f32 to vector<16x18xf32>
    %306 = arith.mulf %303, %305 : vector<16x18xf32>
    %307 = arith.addf %298, %306 : vector<16x18xf32>
    %c66 = arith.constant 66 : index
    %308 = memref.load %arg2[%c66] : memref<72xf32, #tpu.memory_space<smem>>
    %309 = vector.broadcast %308 : f32 to vector<16x18xf32>
    %310 = arith.mulf %303, %309 : vector<16x18xf32>
    %311 = arith.addf %302, %310 : vector<16x18xf32>
    %312 = vector.extract_strided_slice %274 {offsets = [1, 0], sizes = [16, 18], strides = [1, 1]} : vector<18x18xf32> to vector<16x18xf32>
    %c58 = arith.constant 58 : index
    %313 = memref.load %arg2[%c58] : memref<72xf32, #tpu.memory_space<smem>>
    %314 = vector.broadcast %313 : f32 to vector<16x18xf32>
    %315 = arith.mulf %312, %314 : vector<16x18xf32>
    %316 = arith.addf %307, %315 : vector<16x18xf32>
    %c67 = arith.constant 67 : index
    %317 = memref.load %arg2[%c67] : memref<72xf32, #tpu.memory_space<smem>>
    %318 = vector.broadcast %317 : f32 to vector<16x18xf32>
    %319 = arith.mulf %312, %318 : vector<16x18xf32>
    %320 = arith.addf %311, %319 : vector<16x18xf32>
    %321 = vector.extract_strided_slice %275 {offsets = [1, 0], sizes = [16, 18], strides = [1, 1]} : vector<18x18xf32> to vector<16x18xf32>
    %c59 = arith.constant 59 : index
    %322 = memref.load %arg2[%c59] : memref<72xf32, #tpu.memory_space<smem>>
    %323 = vector.broadcast %322 : f32 to vector<16x18xf32>
    %324 = arith.mulf %321, %323 : vector<16x18xf32>
    %325 = arith.addf %316, %324 : vector<16x18xf32>
    %c68 = arith.constant 68 : index
    %326 = memref.load %arg2[%c68] : memref<72xf32, #tpu.memory_space<smem>>
    %327 = vector.broadcast %326 : f32 to vector<16x18xf32>
    %328 = arith.mulf %321, %327 : vector<16x18xf32>
    %329 = arith.addf %320, %328 : vector<16x18xf32>
    %330 = vector.extract_strided_slice %273 {offsets = [2, 0], sizes = [16, 18], strides = [1, 1]} : vector<18x18xf32> to vector<16x18xf32>
    %c60 = arith.constant 60 : index
    %331 = memref.load %arg2[%c60] : memref<72xf32, #tpu.memory_space<smem>>
    %332 = vector.broadcast %331 : f32 to vector<16x18xf32>
    %333 = arith.mulf %330, %332 : vector<16x18xf32>
    %334 = arith.addf %325, %333 : vector<16x18xf32>
    %c69 = arith.constant 69 : index
    %335 = memref.load %arg2[%c69] : memref<72xf32, #tpu.memory_space<smem>>
    %336 = vector.broadcast %335 : f32 to vector<16x18xf32>
    %337 = arith.mulf %330, %336 : vector<16x18xf32>
    %338 = arith.addf %329, %337 : vector<16x18xf32>
    %339 = vector.extract_strided_slice %274 {offsets = [2, 0], sizes = [16, 18], strides = [1, 1]} : vector<18x18xf32> to vector<16x18xf32>
    %c61 = arith.constant 61 : index
    %340 = memref.load %arg2[%c61] : memref<72xf32, #tpu.memory_space<smem>>
    %341 = vector.broadcast %340 : f32 to vector<16x18xf32>
    %342 = arith.mulf %339, %341 : vector<16x18xf32>
    %343 = arith.addf %334, %342 : vector<16x18xf32>
    %c70 = arith.constant 70 : index
    %344 = memref.load %arg2[%c70] : memref<72xf32, #tpu.memory_space<smem>>
    %345 = vector.broadcast %344 : f32 to vector<16x18xf32>
    %346 = arith.mulf %339, %345 : vector<16x18xf32>
    %347 = arith.addf %338, %346 : vector<16x18xf32>
    %348 = vector.extract_strided_slice %275 {offsets = [2, 0], sizes = [16, 18], strides = [1, 1]} : vector<18x18xf32> to vector<16x18xf32>
    %c62 = arith.constant 62 : index
    %349 = memref.load %arg2[%c62] : memref<72xf32, #tpu.memory_space<smem>>
    %350 = vector.broadcast %349 : f32 to vector<16x18xf32>
    %351 = arith.mulf %348, %350 : vector<16x18xf32>
    %352 = arith.addf %343, %351 : vector<16x18xf32>
    %c71 = arith.constant 71 : index
    %353 = memref.load %arg2[%c71] : memref<72xf32, #tpu.memory_space<smem>>
    %354 = vector.broadcast %353 : f32 to vector<16x18xf32>
    %355 = arith.mulf %348, %354 : vector<16x18xf32>
    %356 = arith.addf %347, %355 : vector<16x18xf32>
    %357 = vector.shape_cast %88 : vector<16x18xf32> to vector<1x16x18xf32>
    %358 = vector.shape_cast %92 : vector<16x18xf32> to vector<1x16x18xf32>
    %359 = vector.shape_cast %176 : vector<16x18xf32> to vector<1x16x18xf32>
    %360 = vector.shape_cast %180 : vector<16x18xf32> to vector<1x16x18xf32>
    %361 = vector.shape_cast %264 : vector<16x18xf32> to vector<1x16x18xf32>
    %362 = vector.shape_cast %268 : vector<16x18xf32> to vector<1x16x18xf32>
    %363 = vector.shape_cast %352 : vector<16x18xf32> to vector<1x16x18xf32>
    %364 = vector.shape_cast %356 : vector<16x18xf32> to vector<1x16x18xf32>
    %365 = tpu.concatenate %357, %358, %359, %360, %361, %362, %363, %364 in 0 : vector<1x16x18xf32>, vector<1x16x18xf32>, vector<1x16x18xf32>, vector<1x16x18xf32>, vector<1x16x18xf32>, vector<1x16x18xf32>, vector<1x16x18xf32>, vector<1x16x18xf32> -> vector<8x16x18xf32>
    %c0_30 = arith.constant 0 : index
    %c0_31 = arith.constant 0 : index
    %c0_32 = arith.constant 0 : index
    %c0_33 = arith.constant 0 : index
    %366 = vector.load %arg3[%c0_30, %c0_31, %c0_32, %c0_33] : memref<1x8x16x18xf32, #tpu.memory_space<vmem>>, vector<1x8x16x18xf32>
    %367 = vector.shape_cast %366 : vector<1x8x16x18xf32> to vector<8x16x18xf32>
    %368 = vector.shape_cast %365 : vector<8x16x18xf32> to vector<1x8x16x18xf32>
    tpu.vector_store %arg3[%c0_30, %c0_31, %c0_32, %c0_33], %368 {strides = array<i32>} : memref<1x8x16x18xf32, #tpu.memory_space<vmem>>, vector<1x8x16x18xf32>,
    return
  }
  func.func @transform_0(%arg0: i32) -> (i32, i32, i32, i32) {
    %c0_i32 = arith.constant 0 : i32
    %c0_i32_0 = arith.constant 0 : i32
    %c0_i32_1 = arith.constant 0 : i32
    %c0_i32_2 = arith.constant 0 : i32
    return %arg0, %c0_i32, %c0_i32_0, %c0_i32_1 : i32, i32, i32, i32
  }
  func.func @transform_1(%arg0: i32) -> i32 {
    %c0_i32 = arith.constant 0 : i32
    %c0_i32_0 = arith.constant 0 : i32
    return %c0_i32 : i32
  }
  func.func @transform_2(%arg0: i32) -> (i32, i32, i32, i32) {
    %c0_i32 = arith.constant 0 : i32
    %c0_i32_0 = arith.constant 0 : i32
    %c0_i32_1 = arith.constant 0 : i32
    %c0_i32_2 = arith.constant 0 : i32
    return %arg0, %c0_i32, %c0_i32_0, %c0_i32_1 : i32, i32, i32, i32
  }
}

</mosaic_0001>

<llo_original>
// kernel: tpu_custom_call.1
$region0: #{tpu_custom_call.1}
  #allocation0 [shape = 'u32[]', space=smem, size = 0x4, offset = 0x4, fixed_abs, tag = 'smem constant byte address 0x4 - core index']
  #allocation1 [shape = 'u32[144,128]{1,0:T(1,128)}', space=vmem, size = 0x12000, scoped, tag = 'internal scratch']
  #allocation2 [shape = 'f32[4,18,20]{2,1,0:T(8,128)}', space=vmem, size = 0xc000, scoped, tag = 'scratch operand']
  %s0 = inlined_call_operand.hbm [shape: f32[2,4,16,16], index: 0, kind: input, shape index: {}]
  %s1 = inlined_call_operand.vmem [shape: f32[72], index: 1, kind: input, shape index: {}]
  %s2 = inlined_call_operand.hbm [shape: f32[2,8,16,18], index: 2, kind: output, shape index: {}]
  %s3 = sld [smem:[#allocation0]]
  $region49: #{tpu_custom_call.1} parent=0
    _
  %s5 = ssub.s32 1, %s3
  %s6 = scalar_select 0, %s5, %s3
  $region1: #{tpu_custom_call.1} parent=0
    #allocation3 [shape = 'u8[65536]{0}', space=vmem, size = 0x10000, scoped, tag = 'input window, operand 0']
    #allocation4 [shape = 's32[2]{0}', space=sflag, size = 0x8, scoped, tag = 'scoped memory for tpu_custom_call.1']
    #allocation5 [shape = 's32[2]{0}', space=sflag, size = 0x8, scoped, tag = 'scoped memory for tpu_custom_call.1']
    #allocation6 [shape = 's32[2]{0}', space=sflag, size = 0x8, scoped, tag = 'scoped memory for tpu_custom_call.1']
    #allocation7 [shape = 'u8[512]{0}', space=smem, size = 0x200, scoped, tag = 'input window, operand 1, single buffered']
    #allocation8 [shape = 'u8[131072]{0}', space=vmem, size = 0x20000, scoped, tag = 'output window, operand 0']
    %7 = vsyncpa [#allocation4], 0
    %s8 = scalar_lea.sflag [#allocation4], 1
    %9 = vsyncpa %s8, 0
    %10 = vsyncpa [#allocation6], 0
    %11 = vsyncpa [#allocation5], 0
    %s12 = scalar_lea.sflag [#allocation5], 1
    %13 = vsyncpa %s12, 0
    loop: start=0, step=1, limit=4
    $region2: #{tpu_custom_call.1} parent=1 // loop_pre_header
      _
    $region3: #{tpu_custom_call.1} parent=1 // loop_header
      %s15 = sphi 0, %s19
      %p16 = scmp.ge.s32.totalorder %s15, 4
      %s25 = sphi 0, %s27
      %s28 = sphi 0, %s25
      %s29 = sphi 0, %s28
      %s45 = sphi 0, %s29
      %s49 = sphi 0, %s49
      %s51 = sphi 0, %s49
      %s52 = sphi 0, %s51
      %s66 = sphi 0, %s52
      %s72 = sphi 0, %s74
      %s75 = sphi 0, %s72
      %s76 = sphi 0, %s75
      %s92 = sphi 0, %s76
    $region4: #{tpu_custom_call.1} parent=1 // loop_header_branch
      %18 = sbr.rel (%p16) target = $region8
    $region5: #{tpu_custom_call.1} parent=1 // loop_body
      %s20 = ssub.s32 %s15, 1
      %s21 = ssub.s32 %s15, 2
      %s22 = sadd.s32 %s15, 1
      %s23 = ssub.s32 %s15, %s22
      %p24 = scmp.eq.s32.totalorder %s23, 0
      %s26 = sadd.s32 %s25, 1
      %s27 = scalar_select %p24, %s25, %s26
      %p30 = pneg %p24
      %p31 = scmp.eq.s32.totalorder %s15, 1
      %p32 = por %p30, %p31
      %p33 = scmp.ne.s32.totalorder %s25, %s28
      %p34 = scmp.eq.s32.totalorder %s15, 0
      %p35 = por %p33, %p34
      %p36 = scmp.ne.s32.totalorder %s25, %s28
      %p37 = scmp.eq.s32.totalorder %s20, 1
      %p38 = por %p36, %p37
      %p39 = scmp.ne.s32.totalorder %s28, %s29
      %p40 = scmp.eq.s32.totalorder %s20, 0
      %p41 = por %p39, %p40
      %p42 = scmp.ne.s32.totalorder %s28, %s29
      %p43 = scmp.eq.s32.totalorder %s21, 1
      %p44 = por %p42, %p43
      %p46 = scmp.ne.s32.totalorder %s29, %s45
      %p47 = scmp.eq.s32.totalorder %s21, 0
      %p48 = por %p46, %p47
      %s50 = sadd.s32 %s49, 1
      %p53 = scmp.eq.s32.totalorder %s15, 1
      %p54 = scmp.ne.s32.totalorder %s49, %s51
      %p55 = scmp.eq.s32.totalorder %s15, 0
      %p56 = por %p54, %p55
      %p57 = scmp.ne.s32.totalorder %s49, %s51
      %p58 = scmp.eq.s32.totalorder %s20, 1
      %p59 = por %p57, %p58
      %p60 = scmp.ne.s32.totalorder %s51, %s52
      %p61 = scmp.eq.s32.totalorder %s20, 0
      %p62 = por %p60, %p61
      %p63 = scmp.ne.s32.totalorder %s51, %s52
      %p64 = scmp.eq.s32.totalorder %s21, 1
      %p65 = por %p63, %p64
      %p67 = scmp.ne.s32.totalorder %s52, %s66
      %p68 = scmp.eq.s32.totalorder %s21, 0
      %p69 = por %p67, %p68
      %s70 = ssub.s32 %s15, %s22
      %p71 = scmp.eq.s32.totalorder %s70, 0
      %s73 = sadd.s32 %s72, 1
      %s74 = scalar_select %p71, %s72, %s73
      %p77 = pneg %p71
      %p78 = scmp.eq.s32.totalorder %s15, 1
      %p79 = por %p77, %p78
      %p80 = scmp.ne.s32.totalorder %s72, %s75
      %p81 = scmp.eq.s32.totalorder %s15, 0
      %p82 = por %p80, %p81
      %p83 = scmp.ne.s32.totalorder %s72, %s75
      %p84 = scmp.eq.s32.totalorder %s20, 1
      %p85 = por %p83, %p84
      %p86 = scmp.ne.s32.totalorder %s75, %s76
      %p87 = scmp.eq.s32.totalorder %s20, 0
      %p88 = por %p86, %p87
      %p89 = scmp.ne.s32.totalorder %s75, %s76
      %p90 = scmp.eq.s32.totalorder %s21, 1
      %p91 = por %p89, %p90
      %p93 = scmp.ne.s32.totalorder %s76, %s92
      %p94 = scmp.eq.s32.totalorder %s21, 0
      %p95 = por %p93, %p94
      %p96 = scmp.le.s32.totalorder 1, %s15
      %p97 = scmp.lt.s32.totalorder %s15, 3
      %p98 = pnand %p96, %p97
      %p99 = pneg %p98
      // Predicated region
      $region9: #{tpu_custom_call.1} parent=5 // pred_check
        _
      $region10: #{tpu_custom_call.1} parent=5 // pred_check_branch
        %101 = sbr.rel (%p98) target = $region12
      $region11: #{tpu_custom_call.1} parent=5 // pred_region
        %s102 = ssub.s32 %s15, 1
        // Predicated region
        $region13: #{tpu_custom_call.1} parent=11 // pred_check
          %p103 = pneg %p62
        $region14: #{tpu_custom_call.1} parent=11 // pred_check_branch
          %105 = sbr.rel (%p103) target = $region16
        $region15: #{tpu_custom_call.1} parent=11 // pred_region
          %s107 = ssub.s32 16, 16
          %108 = vsyncadd [#allocation6], %s107
          %s110 = sshll.u32 %s1, 4
          %s111 = int_to_ptr.vmem [resolvable:$true] %s110
          %113 = dma.vmem_to_smem %s111, 16, [#allocation7], [#allocation6]
        $region16: #{tpu_custom_call.1} parent=11 // pred_fallthru
          _
      $region12: #{tpu_custom_call.1} parent=5 // pred_fallthru
        _
      %p114 = scmp.lt.s32.totalorder %s15, 2
      // Predicated region
      $region17: #{tpu_custom_call.1} parent=5 // pred_check
        %p115 = pneg %p114
      $region18: #{tpu_custom_call.1} parent=5 // pred_check_branch
        %117 = sbr.rel (%p115) target = $region20
      $region19: #{tpu_custom_call.1} parent=5 // pred_region
        // Predicated region
        $region21: #{tpu_custom_call.1} parent=19 // pred_check
          %p118 = pneg %p35
        $region22: #{tpu_custom_call.1} parent=19 // pred_check_branch
          %120 = sbr.rel (%p118) target = $region24
        $region23: #{tpu_custom_call.1} parent=19 // pred_region
          %s121 = sand.u32 %s25, 1
          %s122 = scalar_lea.sflag [#allocation4], %s121
          %s123 = sand.u32 %s25, 1
          %s124 = smul.addr %s123, 64
          %s125 = scalar_lea.vmem [#allocation3], %s124
          %s127 = ssub.s32 1024, 1024
          %128 = vsyncadd %s122, %s127
          %s129 = smul.addr %s15, 8
          %s130 = smul.addr %s129, 128
          %s131 = scalar_lea.hbm %s0, %s130
          %s132 = sshll.u32 %s125, 4
          %s133 = int_to_ptr.vmem [resolvable:$true] %s132
          %138 = dma.hbm_to_vmem [thread:$0]  %s131, 1024, %s133, %s122, 128, 128, 8
        $region24: #{tpu_custom_call.1} parent=19 // pred_fallthru
          _
      $region20: #{tpu_custom_call.1} parent=5 // pred_fallthru
        _
      %p139 = scmp.le.s32.totalorder 1, %s15
      %p140 = scmp.lt.s32.totalorder %s15, 3
      %p141 = pnand %p139, %p140
      %p142 = pneg %p141
      // Predicated region
      $region25: #{tpu_custom_call.1} parent=5 // pred_check
        _
      $region26: #{tpu_custom_call.1} parent=5 // pred_check_branch
        %144 = sbr.rel (%p141) target = $region28
      $region27: #{tpu_custom_call.1} parent=5 // pred_region
        %s145 = ssub.s32 %s15, 1
        %s146 = sand.u32 %s28, 1
        %s147 = scalar_lea.sflag [#allocation4], %s146
        %s148 = sand.u32 %s28, 1
        %s149 = smul.addr %s148, 64
        %s150 = scalar_lea.vmem [#allocation3], %s149
        // Predicated region
        $region29: #{tpu_custom_call.1} parent=27 // pred_check
          %p151 = pneg %p41
        $region30: #{tpu_custom_call.1} parent=27 // pred_check_branch
          %153 = sbr.rel (%p151) target = $region32
        $region31: #{tpu_custom_call.1} parent=27 // pred_region
          %154 = dma.done %s147, 1024
        $region32: #{tpu_custom_call.1} parent=27 // pred_fallthru
          _
        // Predicated region
        $region33: #{tpu_custom_call.1} parent=27 // pred_check
          %p155 = pneg %p62
        $region34: #{tpu_custom_call.1} parent=27 // pred_check_branch
          %157 = sbr.rel (%p155) target = $region36
        $region35: #{tpu_custom_call.1} parent=27 // pred_region
          %158 = dma.done [#allocation6], 16
        $region36: #{tpu_custom_call.1} parent=27 // pred_fallthru
          _
        %159 = sfence
        %s160 = sand.u32 %s28, 1
        %s161 = scalar_lea.sflag [#allocation4], %s160
        %s162 = sand.u32 %s28, 1
        %s163 = smul.addr %s162, 64
        %s164 = scalar_lea.vmem [#allocation3], %s163
        %p165 = pneg %p41
        %p166 = pneg %p38
        %p167 = pneg %p62
        %p168 = pneg %p59
        %p169 = pneg %p88
        %p170 = pneg %p85
        %s171 = sand.u32 %s75, 1
        %s172 = scalar_lea.sflag [#allocation5], %s171
        %s173 = sand.u32 %s75, 1
        %s174 = smul.addr %s173, 128
        %s175 = scalar_lea.vmem [#allocation8], %s174
        %vm176 = vcmask 162816
        %177 = vst.msk [vmem:[#allocation2] sm:$0xff] %vm176, 0.0
        %178 = vst.msk [vmem:[#allocation2 + $0x8] sm:$0xff] %vm176, 0.0
        %vm179 = vcmask 156672
        %180 = vst.msk [vmem:[#allocation2 + $0x10] sm:$0x3] %vm179, 0.0
        %181 = vst.msk [vmem:[#allocation2 + $0x18] sm:$0xff] %vm176, 0.0
        %182 = vst.msk [vmem:[#allocation2 + $0x20] sm:$0xff] %vm176, 0.0
        %183 = vst.msk [vmem:[#allocation2 + $0x28] sm:$0x3] %vm179, 0.0
        %184 = vst.msk [vmem:[#allocation2 + $0x30] sm:$0xff] %vm176, 0.0
        %185 = vst.msk [vmem:[#allocation2 + $0x38] sm:$0xff] %vm176, 0.0
        %186 = vst.msk [vmem:[#allocation2 + $0x40] sm:$0x3] %vm179, 0.0
        %187 = vst.msk [vmem:[#allocation2 + $0x48] sm:$0xff] %vm176, 0.0
        %188 = vst.msk [vmem:[#allocation2 + $0x50] sm:$0xff] %vm176, 0.0
        %189 = vst.msk [vmem:[#allocation2 + $0x58] sm:$0x3] %vm179, 0.0
        %v190 = vld [vmem:[%s150] sm:$0xff]
        %v191 = vld [vmem:[%s150 + $0x8] sm:$0xff]
        %v192 = vld [vmem:[%s150 + $0x10] sm:$0xff]
        %v193 = vld [vmem:[%s150 + $0x18] sm:$0xff]
        %v194 = vld [vmem:[%s150 + $0x20] sm:$0xff]
        %v195 = vld [vmem:[%s150 + $0x28] sm:$0xff]
        %v196 = vld [vmem:[%s150 + $0x30] sm:$0xff]
        %v197 = vld [vmem:[%s150 + $0x38] sm:$0xff]
        %206 = vrot.lane.b32.xlu0 %v190, 2
        %v207 = vpop.permute.xlu0 %206
        %208 = vrot.lane.b32.xlu0 %v191, 2
        %v209 = vpop.permute.xlu0 %208
        %210 = vrot.lane.b32.xlu0 %v192, 2
        %v211 = vpop.permute.xlu0 %210
        %212 = vrot.lane.b32.xlu0 %v193, 2
        %v213 = vpop.permute.xlu0 %212
        %214 = vrot.lane.b32.xlu0 %v194, 2
        %v215 = vpop.permute.xlu0 %214
        %216 = vrot.lane.b32.xlu0 %v195, 2
        %v217 = vpop.permute.xlu0 %216
        %218 = vrot.lane.b32.xlu0 %v196, 2
        %v219 = vpop.permute.xlu0 %218
        %220 = vrot.lane.b32.xlu0 %v197, 2
        %v221 = vpop.permute.xlu0 %220
        %vm230 = vcmask 146448
        %231 = vst.msk [vmem:[#allocation2 + $0x1] sm:$0xff] %vm230, %v207
        %232 = vst.msk [vmem:[#allocation2 + $0x9] sm:$0xff] %vm230, %v209
        %233 = vst.msk [vmem:[#allocation2 + $0x19] sm:$0xff] %vm230, %v211
        %234 = vst.msk [vmem:[#allocation2 + $0x21] sm:$0xff] %vm230, %v213
        %235 = vst.msk [vmem:[#allocation2 + $0x31] sm:$0xff] %vm230, %v215
        %236 = vst.msk [vmem:[#allocation2 + $0x39] sm:$0xff] %vm230, %v217
        %237 = vst.msk [vmem:[#allocation2 + $0x49] sm:$0xff] %vm230, %v219
        %238 = vst.msk [vmem:[#allocation2 + $0x51] sm:$0xff] %vm230, %v221
        %v239 = vld [vmem:[#allocation2] sm:$0xff]
        %v240 = vld [vmem:[#allocation2 + $0x8] sm:$0xff]
        %v241 = vld [vmem:[#allocation2 + $0x10] sm:$0x3]
        %s242 = sld [smem:[#allocation7]]
        %v243 = vstv %s242
        %v244 = vmul.f32 %v239, %v243
        %v245 = vmul.f32 %v240, %v243
        %v246 = vadd.f32 %v244, 0.0
        %v247 = vadd.f32 %v245, 0.0
        %s248 = sld [smem:[#allocation7 + $0x9]]
        %v249 = vstv %s248
        %v250 = vmul.f32 %v239, %v249
        %v251 = vmul.f32 %v240, %v249
        %v252 = vadd.f32 %v250, 0.0
        %v253 = vadd.f32 %v251, 0.0
        %s254 = sld [smem:[#allocation7 + $0x1]]
        %v255 = vstv %s254
        %v256 = vmul.f32 %v239, %v255
        %v257 = vmul.f32 %v240, %v255
        %260 = vrot.lane.b32.xlu0 %v256, 127
        %v261 = vpop.permute.xlu0 %260
        %262 = vrot.lane.b32.xlu0 %v257, 127
        %v263 = vpop.permute.xlu0 %262
        %v266 = vadd.f32 %v246, %v261
        %v267 = vadd.f32 %v247, %v263
        %s268 = sld [smem:[#allocation7 + $0xa]]
        %v269 = vstv %s268
        %v270 = vmul.f32 %v239, %v269
        %v271 = vmul.f32 %v240, %v269
        %274 = vrot.lane.b32.xlu0 %v270, 127
        %v275 = vpop.permute.xlu0 %274
        %276 = vrot.lane.b32.xlu0 %v271, 127
        %v277 = vpop.permute.xlu0 %276
        %v280 = vadd.f32 %v252, %v275
        %v281 = vadd.f32 %v253, %v277
        %s282 = sld [smem:[#allocation7 + $0x2]]
        %v283 = vstv %s282
        %v284 = vmul.f32 %v239, %v283
        %v285 = vmul.f32 %v240, %v283
        %288 = vrot.lane.b32.xlu0 %v284, 126
        %v289 = vpop.permute.xlu0 %288
        %290 = vrot.lane.b32.xlu0 %v285, 126
        %v291 = vpop.permute.xlu0 %290
        %v294 = vadd.f32 %v266, %v289
        %v295 = vadd.f32 %v267, %v291
        %s296 = sld [smem:[#allocation7 + $0xb]]
        %v297 = vstv %s296
        %v298 = vmul.f32 %v239, %v297
        %v299 = vmul.f32 %v240, %v297
        %302 = vrot.lane.b32.xlu0 %v298, 126
        %v303 = vpop.permute.xlu0 %302
        %304 = vrot.lane.b32.xlu0 %v299, 126
        %v305 = vpop.permute.xlu0 %304
        %v308 = vadd.f32 %v280, %v303
        %v309 = vadd.f32 %v281, %v305
        %s310 = sld [smem:[#allocation7 + $0x3]]
        %v311 = vstv %s310
        %v312 = vmul.f32 %v239, %v311
        %v313 = vmul.f32 %v240, %v311
        %v314 = vmul.f32 %v241, %v311
        %vm318 = vcmask 1046528
        %v319 = vrot.slane %v312, 1
        %v320 = vrot.slane %v313, 1
        %v321 = vsel %vm318, %v319, %v320
        %v322 = vrot.slane %v314, 1
        %v323 = vsel %vm318, %v320, %v322
        %v326 = vadd.f32 %v294, %v321
        %v327 = vadd.f32 %v295, %v323
        %s328 = sld [smem:[#allocation7 + $0xc]]
        %v329 = vstv %s328
        %v330 = vmul.f32 %v239, %v329
        %v331 = vmul.f32 %v240, %v329
        %v332 = vmul.f32 %v241, %v329
        %v336 = vrot.slane %v330, 1
        %v337 = vrot.slane %v331, 1
        %v338 = vsel %vm318, %v336, %v337
        %v339 = vrot.slane %v332, 1
        %v340 = vsel %vm318, %v337, %v339
        %v343 = vadd.f32 %v308, %v338
        %v344 = vadd.f32 %v309, %v340
        %s345 = sld [smem:[#allocation7 + $0x4]]
        %v346 = vstv %s345
        %v347 = vmul.f32 %v239, %v346
        %v348 = vmul.f32 %v240, %v346
        %v349 = vmul.f32 %v241, %v346
        %v353 = vrot.slane %v347, 1
        %v354 = vrot.slane %v348, 1
        %v355 = vsel %vm318, %v353, %v354
        %v356 = vrot.slane %v349, 1
        %v357 = vsel %vm318, %v354, %v356
        %358 = vrot.lane.b32.xlu0 %v355, 127
        %v359 = vpop.permute.xlu0 %358
        %360 = vrot.lane.b32.xlu0 %v357, 127
        %v361 = vpop.permute.xlu0 %360
        %v364 = vadd.f32 %v326, %v359
        %v365 = vadd.f32 %v327, %v361
        %s366 = sld [smem:[#allocation7 + $0xd]]
        %v367 = vstv %s366
        %v368 = vmul.f32 %v239, %v367
        %v369 = vmul.f32 %v240, %v367
        %v370 = vmul.f32 %v241, %v367
        %v374 = vrot.slane %v368, 1
        %v375 = vrot.slane %v369, 1
        %v376 = vsel %vm318, %v374, %v375
        %v377 = vrot.slane %v370, 1
        %v378 = vsel %vm318, %v375, %v377
        %379 = vrot.lane.b32.xlu0 %v376, 127
        %v380 = vpop.permute.xlu0 %379
        %381 = vrot.lane.b32.xlu0 %v378, 127
        %v382 = vpop.permute.xlu0 %381
        %v385 = vadd.f32 %v343, %v380
        %v386 = vadd.f32 %v344, %v382
        %s387 = sld [smem:[#allocation7 + $0x5]]
        %v388 = vstv %s387
        %v389 = vmul.f32 %v239, %v388
        %v390 = vmul.f32 %v240, %v388
        %v391 = vmul.f32 %v241, %v388
        %v395 = vrot.slane %v389, 1
        %v396 = vrot.slane %v390, 1
        %v397 = vsel %vm318, %v395, %v396
        %v398 = vrot.slane %v391, 1
        %v399 = vsel %vm318, %v396, %v398
        %400 = vrot.lane.b32.xlu0 %v397, 126
        %v401 = vpop.permute.xlu0 %400
        %402 = vrot.lane.b32.xlu0 %v399, 126
        %v403 = vpop.permute.xlu0 %402
        %v406 = vadd.f32 %v364, %v401
        %v407 = vadd.f32 %v365, %v403
        %s408 = sld [smem:[#allocation7 + $0xe]]
        %v409 = vstv %s408
        %v410 = vmul.f32 %v239, %v409
        %v411 = vmul.f32 %v240, %v409
        %v412 = vmul.f32 %v241, %v409
        %v416 = vrot.slane %v410, 1
        %v417 = vrot.slane %v411, 1
        %v418 = vsel %vm318, %v416, %v417
        %v419 = vrot.slane %v412, 1
        %v420 = vsel %vm318, %v417, %v419
        %421 = vrot.lane.b32.xlu0 %v418, 126
        %v422 = vpop.permute.xlu0 %421
        %423 = vrot.lane.b32.xlu0 %v420, 126
        %v424 = vpop.permute.xlu0 %423
        %v427 = vadd.f32 %v385, %v422
        %v428 = vadd.f32 %v386, %v424
        %s429 = sld [smem:[#allocation7 + $0x6]]
        %v430 = vstv %s429
        %v431 = vmul.f32 %v239, %v430
        %v432 = vmul.f32 %v240, %v430
        %v433 = vmul.f32 %v241, %v430
        %vm437 = vcmask 1045504
        %v438 = vrot.slane %v431, 2
        %v439 = vrot.slane %v432, 2
        %v440 = vsel %vm437, %v438, %v439
        %v441 = vrot.slane %v433, 2
        %v442 = vsel %vm437, %v439, %v441
        %v445 = vadd.f32 %v406, %v440
        %v446 = vadd.f32 %v407, %v442
        %s447 = sld [smem:[#allocation7 + $0xf]]
        %v448 = vstv %s447
        %v449 = vmul.f32 %v239, %v448
        %v450 = vmul.f32 %v240, %v448
        %v451 = vmul.f32 %v241, %v448
        %v455 = vrot.slane %v449, 2
        %v456 = vrot.slane %v450, 2
        %v457 = vsel %vm437, %v455, %v456
        %v458 = vrot.slane %v451, 2
        %v459 = vsel %vm437, %v456, %v458
        %v462 = vadd.f32 %v427, %v457
        %v463 = vadd.f32 %v428, %v459
        %s464 = sld [smem:[#allocation7 + $0x7]]
        %v465 = vstv %s464
        %v466 = vmul.f32 %v239, %v465
        %v467 = vmul.f32 %v240, %v465
        %v468 = vmul.f32 %v241, %v465
        %v472 = vrot.slane %v466, 2
        %v473 = vrot.slane %v467, 2
        %v474 = vsel %vm437, %v472, %v473
        %v475 = vrot.slane %v468, 2
        %v476 = vsel %vm437, %v473, %v475
        %477 = vrot.lane.b32.xlu0 %v474, 127
        %v478 = vpop.permute.xlu0 %477
        %479 = vrot.lane.b32.xlu0 %v476, 127
        %v480 = vpop.permute.xlu0 %479
        %v483 = vadd.f32 %v445, %v478
        %v484 = vadd.f32 %v446, %v480
        %s485 = sld [smem:[#allocation7 + $0x10]]
        %v486 = vstv %s485
        %v487 = vmul.f32 %v239, %v486
        %v488 = vmul.f32 %v240, %v486
        %v489 = vmul.f32 %v241, %v486
        %v493 = vrot.slane %v487, 2
        %v494 = vrot.slane %v488, 2
        %v495 = vsel %vm437, %v493, %v494
        %v496 = vrot.slane %v489, 2
        %v497 = vsel %vm437, %v494, %v496
        %498 = vrot.lane.b32.xlu0 %v495, 127
        %v499 = vpop.permute.xlu0 %498
        %500 = vrot.lane.b32.xlu0 %v497, 127
        %v501 = vpop.permute.xlu0 %500
        %v504 = vadd.f32 %v462, %v499
        %v505 = vadd.f32 %v463, %v501
        %s506 = sld [smem:[#allocation7 + $0x8]]
        %v507 = vstv %s506
        %v508 = vmul.f32 %v239, %v507
        %v509 = vmul.f32 %v240, %v507
        %v510 = vmul.f32 %v241, %v507
        %v514 = vrot.slane %v508, 2
        %v515 = vrot.slane %v509, 2
        %v516 = vsel %vm437, %v514, %v515
        %v517 = vrot.slane %v510, 2
        %v518 = vsel %vm437, %v515, %v517
        %519 = vrot.lane.b32.xlu0 %v516, 126
        %v520 = vpop.permute.xlu0 %519
        %521 = vrot.lane.b32.xlu0 %v518, 126
        %v522 = vpop.permute.xlu0 %521
        %v525 = vadd.f32 %v483, %v520
        %v526 = vadd.f32 %v484, %v522
        %s527 = sld [smem:[#allocation7 + $0x11]]
        %v528 = vstv %s527
        %v529 = vmul.f32 %v239, %v528
        %v530 = vmul.f32 %v240, %v528
        %v531 = vmul.f32 %v241, %v528
        %v535 = vrot.slane %v529, 2
        %v536 = vrot.slane %v530, 2
        %v537 = vsel %vm437, %v535, %v536
        %v538 = vrot.slane %v531, 2
        %v539 = vsel %vm437, %v536, %v538
        %540 = vrot.lane.b32.xlu0 %v537, 126
        %v541 = vpop.permute.xlu0 %540
        %542 = vrot.lane.b32.xlu0 %v539, 126
        %v543 = vpop.permute.xlu0 %542
        %v546 = vadd.f32 %v504, %v541
        %v547 = vadd.f32 %v505, %v543
        %s548 = scalar_lea.vmem [#allocation2], 24
        %v549 = vld [vmem:[%s548] sm:$0xff]
        %v550 = vld [vmem:[%s548 + $0x8] sm:$0xff]
        %v551 = vld [vmem:[%s548 + $0x10] sm:$0x3]
        %s552 = sld [smem:[#allocation7 + $0x12]]
        %v553 = vstv %s552
        %v554 = vmul.f32 %v549, %v553
        %v555 = vmul.f32 %v550, %v553
        %v556 = vadd.f32 %v554, 0.0
        %v557 = vadd.f32 %v555, 0.0
        %s558 = sld [smem:[#allocation7 + $0x1b]]
        %v559 = vstv %s558
        %v560 = vmul.f32 %v549, %v559
        %v561 = vmul.f32 %v550, %v559
        %v562 = vadd.f32 %v560, 0.0
        %v563 = vadd.f32 %v561, 0.0
        %s564 = sld [smem:[#allocation7 + $0x13]]
        %v565 = vstv %s564
        %v566 = vmul.f32 %v549, %v565
        %v567 = vmul.f32 %v550, %v565
        %570 = vrot.lane.b32.xlu0 %v566, 127
        %v571 = vpop.permute.xlu0 %570
        %572 = vrot.lane.b32.xlu0 %v567, 127
        %v573 = vpop.permute.xlu0 %572
        %v576 = vadd.f32 %v556, %v571
        %v577 = vadd.f32 %v557, %v573
        %s578 = sld [smem:[#allocation7 + $0x1c]]
        %v579 = vstv %s578
        %v580 = vmul.f32 %v549, %v579
        %v581 = vmul.f32 %v550, %v579
        %584 = vrot.lane.b32.xlu0 %v580, 127
        %v585 = vpop.permute.xlu0 %584
        %586 = vrot.lane.b32.xlu0 %v581, 127
        %v587 = vpop.permute.xlu0 %586
        %v590 = vadd.f32 %v562, %v585
        %v591 = vadd.f32 %v563, %v587
        %s592 = sld [smem:[#allocation7 + $0x14]]
        %v593 = vstv %s592
        %v594 = vmul.f32 %v549, %v593
        %v595 = vmul.f32 %v550, %v593
        %598 = vrot.lane.b32.xlu0 %v594, 126
        %v599 = vpop.permute.xlu0 %598
        %600 = vrot.lane.b32.xlu0 %v595, 126
        %v601 = vpop.permute.xlu0 %600
        %v604 = vadd.f32 %v576, %v599
        %v605 = vadd.f32 %v577, %v601
        %s606 = sld [smem:[#allocation7 + $0x1d]]
        %v607 = vstv %s606
        %v608 = vmul.f32 %v549, %v607
        %v609 = vmul.f32 %v550, %v607
        %612 = vrot.lane.b32.xlu0 %v608, 126
        %v613 = vpop.permute.xlu0 %612
        %614 = vrot.lane.b32.xlu0 %v609, 126
        %v615 = vpop.permute.xlu0 %614
        %v618 = vadd.f32 %v590, %v613
        %v619 = vadd.f32 %v591, %v615
        %s620 = sld [smem:[#allocation7 + $0x15]]
        %v621 = vstv %s620
        %v622 = vmul.f32 %v549, %v621
        %v623 = vmul.f32 %v550, %v621
        %v624 = vmul.f32 %v551, %v621
        %v628 = vrot.slane %v622, 1
        %v629 = vrot.slane %v623, 1
        %v630 = vsel %vm318, %v628, %v629
        %v631 = vrot.slane %v624, 1
        %v632 = vsel %vm318, %v629, %v631
        %v635 = vadd.f32 %v604, %v630
        %v636 = vadd.f32 %v605, %v632
        %s637 = sld [smem:[#allocation7 + $0x1e]]
        %v638 = vstv %s637
        %v639 = vmul.f32 %v549, %v638
        %v640 = vmul.f32 %v550, %v638
        %v641 = vmul.f32 %v551, %v638
        %v645 = vrot.slane %v639, 1
        %v646 = vrot.slane %v640, 1
        %v647 = vsel %vm318, %v645, %v646
        %v648 = vrot.slane %v641, 1
        %v649 = vsel %vm318, %v646, %v648
        %v652 = vadd.f32 %v618, %v647
        %v653 = vadd.f32 %v619, %v649
        %s654 = sld [smem:[#allocation7 + $0x16]]
        %v655 = vstv %s654
        %v656 = vmul.f32 %v549, %v655
        %v657 = vmul.f32 %v550, %v655
        %v658 = vmul.f32 %v551, %v655
        %v662 = vrot.slane %v656, 1
        %v663 = vrot.slane %v657, 1
        %v664 = vsel %vm318, %v662, %v663
        %v665 = vrot.slane %v658, 1
        %v666 = vsel %vm318, %v663, %v665
        %667 = vrot.lane.b32.xlu0 %v664, 127
        %v668 = vpop.permute.xlu0 %667
        %669 = vrot.lane.b32.xlu0 %v666, 127
        %v670 = vpop.permute.xlu0 %669
        %v673 = vadd.f32 %v635, %v668
        %v674 = vadd.f32 %v636, %v670
        %s675 = sld [smem:[#allocation7 + $0x1f]]
        %v676 = vstv %s675
        %v677 = vmul.f32 %v549, %v676
        %v678 = vmul.f32 %v550, %v676
        %v679 = vmul.f32 %v551, %v676
        %v683 = vrot.slane %v677, 1
        %v684 = vrot.slane %v678, 1
        %v685 = vsel %vm318, %v683, %v684
        %v686 = vrot.slane %v679, 1
        %v687 = vsel %vm318, %v684, %v686
        %688 = vrot.lane.b32.xlu0 %v685, 127
        %v689 = vpop.permute.xlu0 %688
        %690 = vrot.lane.b32.xlu0 %v687, 127
        %v691 = vpop.permute.xlu0 %690
        %v694 = vadd.f32 %v652, %v689
        %v695 = vadd.f32 %v653, %v691
        %s696 = sld [smem:[#allocation7 + $0x17]]
        %v697 = vstv %s696
        %v698 = vmul.f32 %v549, %v697
        %v699 = vmul.f32 %v550, %v697
        %v700 = vmul.f32 %v551, %v697
        %v704 = vrot.slane %v698, 1
        %v705 = vrot.slane %v699, 1
        %v706 = vsel %vm318, %v704, %v705
        %v707 = vrot.slane %v700, 1
        %v708 = vsel %vm318, %v705, %v707
        %709 = vrot.lane.b32.xlu0 %v706, 126
        %v710 = vpop.permute.xlu0 %709
        %711 = vrot.lane.b32.xlu0 %v708, 126
        %v712 = vpop.permute.xlu0 %711
        %v715 = vadd.f32 %v673, %v710
        %v716 = vadd.f32 %v674, %v712
        %s717 = sld [smem:[#allocation7 + $0x20]]
        %v718 = vstv %s717
        %v719 = vmul.f32 %v549, %v718
        %v720 = vmul.f32 %v550, %v718
        %v721 = vmul.f32 %v551, %v718
        %v725 = vrot.slane %v719, 1
        %v726 = vrot.slane %v720, 1
        %v727 = vsel %vm318, %v725, %v726
        %v728 = vrot.slane %v721, 1
        %v729 = vsel %vm318, %v726, %v728
        %730 = vrot.lane.b32.xlu0 %v727, 126
        %v731 = vpop.permute.xlu0 %730
        %732 = vrot.lane.b32.xlu0 %v729, 126
        %v733 = vpop.permute.xlu0 %732
        %v736 = vadd.f32 %v694, %v731
        %v737 = vadd.f32 %v695, %v733
        %s738 = sld [smem:[#allocation7 + $0x18]]
        %v739 = vstv %s738
        %v740 = vmul.f32 %v549, %v739
        %v741 = vmul.f32 %v550, %v739
        %v742 = vmul.f32 %v551, %v739
        %v746 = vrot.slane %v740, 2
        %v747 = vrot.slane %v741, 2
        %v748 = vsel %vm437, %v746, %v747
        %v749 = vrot.slane %v742, 2
        %v750 = vsel %vm437, %v747, %v749
        %v753 = vadd.f32 %v715, %v748
        %v754 = vadd.f32 %v716, %v750
        %s755 = sld [smem:[#allocation7 + $0x21]]
        %v756 = vstv %s755
        %v757 = vmul.f32 %v549, %v756
        %v758 = vmul.f32 %v550, %v756
        %v759 = vmul.f32 %v551, %v756
        %v763 = vrot.slane %v757, 2
        %v764 = vrot.slane %v758, 2
        %v765 = vsel %vm437, %v763, %v764
        %v766 = vrot.slane %v759, 2
        %v767 = vsel %vm437, %v764, %v766
        %v770 = vadd.f32 %v736, %v765
        %v771 = vadd.f32 %v737, %v767
        %s772 = sld [smem:[#allocation7 + $0x19]]
        %v773 = vstv %s772
        %v774 = vmul.f32 %v549, %v773
        %v775 = vmul.f32 %v550, %v773
        %v776 = vmul.f32 %v551, %v773
        %v780 = vrot.slane %v774, 2
        %v781 = vrot.slane %v775, 2
        %v782 = vsel %vm437, %v780, %v781
        %v783 = vrot.slane %v776, 2
        %v784 = vsel %vm437, %v781, %v783
        %785 = vrot.lane.b32.xlu0 %v782, 127
        %v786 = vpop.permute.xlu0 %785
        %787 = vrot.lane.b32.xlu0 %v784, 127
        %v788 = vpop.permute.xlu0 %787
        %v791 = vadd.f32 %v753, %v786
        %v792 = vadd.f32 %v754, %v788
        %s793 = sld [smem:[#allocation7 + $0x22]]
        %v794 = vstv %s793
        %v795 = vmul.f32 %v549, %v794
        %v796 = vmul.f32 %v550, %v794
        %v797 = vmul.f32 %v551, %v794
        %v801 = vrot.slane %v795, 2
        %v802 = vrot.slane %v796, 2
        %v803 = vsel %vm437, %v801, %v802
        %v804 = vrot.slane %v797, 2
        %v805 = vsel %vm437, %v802, %v804
        %806 = vrot.lane.b32.xlu0 %v803, 127
        %v807 = vpop.permute.xlu0 %806
        %808 = vrot.lane.b32.xlu0 %v805, 127
        %v809 = vpop.permute.xlu0 %808
        %v812 = vadd.f32 %v770, %v807
        %v813 = vadd.f32 %v771, %v809
        %s814 = sld [smem:[#allocation7 + $0x1a]]
        %v815 = vstv %s814
        %v816 = vmul.f32 %v549, %v815
        %v817 = vmul.f32 %v550, %v815
        %v818 = vmul.f32 %v551, %v815
        %v822 = vrot.slane %v816, 2
        %v823 = vrot.slane %v817, 2
        %v824 = vsel %vm437, %v822, %v823
        %v825 = vrot.slane %v818, 2
        %v826 = vsel %vm437, %v823, %v825
        %827 = vrot.lane.b32.xlu0 %v824, 126
        %v828 = vpop.permute.xlu0 %827
        %829 = vrot.lane.b32.xlu0 %v826, 126
        %v830 = vpop.permute.xlu0 %829
        %v833 = vadd.f32 %v791, %v828
        %v834 = vadd.f32 %v792, %v830
        %s835 = sld [smem:[#allocation7 + $0x23]]
        %v836 = vstv %s835
        %v837 = vmul.f32 %v549, %v836
        %v838 = vmul.f32 %v550, %v836
        %v839 = vmul.f32 %v551, %v836
        %v843 = vrot.slane %v837, 2
        %v844 = vrot.slane %v838, 2
        %v845 = vsel %vm437, %v843, %v844
        %v846 = vrot.slane %v839, 2
        %v847 = vsel %vm437, %v844, %v846
        %848 = vrot.lane.b32.xlu0 %v845, 126
        %v849 = vpop.permute.xlu0 %848
        %850 = vrot.lane.b32.xlu0 %v847, 126
        %v851 = vpop.permute.xlu0 %850
        %v854 = vadd.f32 %v812, %v849
        %v855 = vadd.f32 %v813, %v851
        %s856 = scalar_lea.vmem [#allocation2], 48
        %v857 = vld [vmem:[%s856] sm:$0xff]
        %v858 = vld [vmem:[%s856 + $0x8] sm:$0xff]
        %v859 = vld [vmem:[%s856 + $0x10] sm:$0x3]
        %s860 = sld [smem:[#allocation7 + $0x24]]
        %v861 = vstv %s860
        %v862 = vmul.f32 %v857, %v861
        %v863 = vmul.f32 %v858, %v861
        %v864 = vadd.f32 %v862, 0.0
        %v865 = vadd.f32 %v863, 0.0
        %s866 = sld [smem:[#allocation7 + $0x2d]]
        %v867 = vstv %s866
        %v868 = vmul.f32 %v857, %v867
        %v869 = vmul.f32 %v858, %v867
        %v870 = vadd.f32 %v868, 0.0
        %v871 = vadd.f32 %v869, 0.0
        %s872 = sld [smem:[#allocation7 + $0x25]]
        %v873 = vstv %s872
        %v874 = vmul.f32 %v857, %v873
        %v875 = vmul.f32 %v858, %v873
        %878 = vrot.lane.b32.xlu0 %v874, 127
        %v879 = vpop.permute.xlu0 %878
        %880 = vrot.lane.b32.xlu0 %v875, 127
        %v881 = vpop.permute.xlu0 %880
        %v884 = vadd.f32 %v864, %v879
        %v885 = vadd.f32 %v865, %v881
        %s886 = sld [smem:[#allocation7 + $0x2e]]
        %v887 = vstv %s886
        %v888 = vmul.f32 %v857, %v887
        %v889 = vmul.f32 %v858, %v887
        %892 = vrot.lane.b32.xlu0 %v888, 127
        %v893 = vpop.permute.xlu0 %892
        %894 = vrot.lane.b32.xlu0 %v889, 127
        %v895 = vpop.permute.xlu0 %894
        %v898 = vadd.f32 %v870, %v893
        %v899 = vadd.f32 %v871, %v895
        %s900 = sld [smem:[#allocation7 + $0x26]]
        %v901 = vstv %s900
        %v902 = vmul.f32 %v857, %v901
        %v903 = vmul.f32 %v858, %v901
        %906 = vrot.lane.b32.xlu0 %v902, 126
        %v907 = vpop.permute.xlu0 %906
        %908 = vrot.lane.b32.xlu0 %v903, 126
        %v909 = vpop.permute.xlu0 %908
        %v912 = vadd.f32 %v884, %v907
        %v913 = vadd.f32 %v885, %v909
        %s914 = sld [smem:[#allocation7 + $0x2f]]
        %v915 = vstv %s914
        %v916 = vmul.f32 %v857, %v915
        %v917 = vmul.f32 %v858, %v915
        %920 = vrot.lane.b32.xlu0 %v916, 126
        %v921 = vpop.permute.xlu0 %920
        %922 = vrot.lane.b32.xlu0 %v917, 126
        %v923 = vpop.permute.xlu0 %922
        %v926 = vadd.f32 %v898, %v921
        %v927 = vadd.f32 %v899, %v923
        %s928 = sld [smem:[#allocation7 + $0x27]]
        %v929 = vstv %s928
        %v930 = vmul.f32 %v857, %v929
        %v931 = vmul.f32 %v858, %v929
        %v932 = vmul.f32 %v859, %v929
        %v936 = vrot.slane %v930, 1
        %v937 = vrot.slane %v931, 1
        %v938 = vsel %vm318, %v936, %v937
        %v939 = vrot.slane %v932, 1
        %v940 = vsel %vm318, %v937, %v939
        %v943 = vadd.f32 %v912, %v938
        %v944 = vadd.f32 %v913, %v940
        %s945 = sld [smem:[#allocation7 + $0x30]]
        %v946 = vstv %s945
        %v947 = vmul.f32 %v857, %v946
        %v948 = vmul.f32 %v858, %v946
        %v949 = vmul.f32 %v859, %v946
        %v953 = vrot.slane %v947, 1
        %v954 = vrot.slane %v948, 1
        %v955 = vsel %vm318, %v953, %v954
        %v956 = vrot.slane %v949, 1
        %v957 = vsel %vm318, %v954, %v956
        %v960 = vadd.f32 %v926, %v955
        %v961 = vadd.f32 %v927, %v957
        %s962 = sld [smem:[#allocation7 + $0x28]]
        %v963 = vstv %s962
        %v964 = vmul.f32 %v857, %v963
        %v965 = vmul.f32 %v858, %v963
        %v966 = vmul.f32 %v859, %v963
        %v970 = vrot.slane %v964, 1
        %v971 = vrot.slane %v965, 1
        %v972 = vsel %vm318, %v970, %v971
        %v973 = vrot.slane %v966, 1
        %v974 = vsel %vm318, %v971, %v973
        %975 = vrot.lane.b32.xlu0 %v972, 127
        %v976 = vpop.permute.xlu0 %975
        %977 = vrot.lane.b32.xlu0 %v974, 127
        %v978 = vpop.permute.xlu0 %977
        %v981 = vadd.f32 %v943, %v976
        %v982 = vadd.f32 %v944, %v978
        %s983 = sld [smem:[#allocation7 + $0x31]]
        %v984 = vstv %s983
        %v985 = vmul.f32 %v857, %v984
        %v986 = vmul.f32 %v858, %v984
        %v987 = vmul.f32 %v859, %v984
        %v991 = vrot.slane %v985, 1
        %v992 = vrot.slane %v986, 1
        %v993 = vsel %vm318, %v991, %v992
        %v994 = vrot.slane %v987, 1
        %v995 = vsel %vm318, %v992, %v994
        %996 = vrot.lane.b32.xlu0 %v993, 127
        %v997 = vpop.permute.xlu0 %996
        %998 = vrot.lane.b32.xlu0 %v995, 127
        %v999 = vpop.permute.xlu0 %998
        %v1002 = vadd.f32 %v960, %v997
        %v1003 = vadd.f32 %v961, %v999
        %s1004 = sld [smem:[#allocation7 + $0x29]]
        %v1005 = vstv %s1004
        %v1006 = vmul.f32 %v857, %v1005
        %v1007 = vmul.f32 %v858, %v1005
        %v1008 = vmul.f32 %v859, %v1005
        %v1012 = vrot.slane %v1006, 1
        %v1013 = vrot.slane %v1007, 1
        %v1014 = vsel %vm318, %v1012, %v1013
        %v1015 = vrot.slane %v1008, 1
        %v1016 = vsel %vm318, %v1013, %v1015
        %1017 = vrot.lane.b32.xlu0 %v1014, 126
        %v1018 = vpop.permute.xlu0 %1017
        %1019 = vrot.lane.b32.xlu0 %v1016, 126
        %v1020 = vpop.permute.xlu0 %1019
        %v1023 = vadd.f32 %v981, %v1018
        %v1024 = vadd.f32 %v982, %v1020
        %s1025 = sld [smem:[#allocation7 + $0x32]]
        %v1026 = vstv %s1025
        %v1027 = vmul.f32 %v857, %v1026
        %v1028 = vmul.f32 %v858, %v1026
        %v1029 = vmul.f32 %v859, %v1026
        %v1033 = vrot.slane %v1027, 1
        %v1034 = vrot.slane %v1028, 1
        %v1035 = vsel %vm318, %v1033, %v1034
        %v1036 = vrot.slane %v1029, 1
        %v1037 = vsel %vm318, %v1034, %v1036
        %1038 = vrot.lane.b32.xlu0 %v1035, 126
        %v1039 = vpop.permute.xlu0 %1038
        %1040 = vrot.lane.b32.xlu0 %v1037, 126
        %v1041 = vpop.permute.xlu0 %1040
        %v1044 = vadd.f32 %v1002, %v1039
        %v1045 = vadd.f32 %v1003, %v1041
        %s1046 = sld [smem:[#allocation7 + $0x2a]]
        %v1047 = vstv %s1046
        %v1048 = vmul.f32 %v857, %v1047
        %v1049 = vmul.f32 %v858, %v1047
        %v1050 = vmul.f32 %v859, %v1047
        %v1054 = vrot.slane %v1048, 2
        %v1055 = vrot.slane %v1049, 2
        %v1056 = vsel %vm437, %v1054, %v1055
        %v1057 = vrot.slane %v1050, 2
        %v1058 = vsel %vm437, %v1055, %v1057
        %v1061 = vadd.f32 %v1023, %v1056
        %v1062 = vadd.f32 %v1024, %v1058
        %s1063 = sld [smem:[#allocation7 + $0x33]]
        %v1064 = vstv %s1063
        %v1065 = vmul.f32 %v857, %v1064
        %v1066 = vmul.f32 %v858, %v1064
        %v1067 = vmul.f32 %v859, %v1064
        %v1071 = vrot.slane %v1065, 2
        %v1072 = vrot.slane %v1066, 2
        %v1073 = vsel %vm437, %v1071, %v1072
        %v1074 = vrot.slane %v1067, 2
        %v1075 = vsel %vm437, %v1072, %v1074
        %v1078 = vadd.f32 %v1044, %v1073
        %v1079 = vadd.f32 %v1045, %v1075
        %s1080 = sld [smem:[#allocation7 + $0x2b]]
        %v1081 = vstv %s1080
        %v1082 = vmul.f32 %v857, %v1081
        %v1083 = vmul.f32 %v858, %v1081
        %v1084 = vmul.f32 %v859, %v1081
        %v1088 = vrot.slane %v1082, 2
        %v1089 = vrot.slane %v1083, 2
        %v1090 = vsel %vm437, %v1088, %v1089
        %v1091 = vrot.slane %v1084, 2
        %v1092 = vsel %vm437, %v1089, %v1091
        %1093 = vrot.lane.b32.xlu0 %v1090, 127
        %v1094 = vpop.permute.xlu0 %1093
        %1095 = vrot.lane.b32.xlu0 %v1092, 127
        %v1096 = vpop.permute.xlu0 %1095
        %v1099 = vadd.f32 %v1061, %v1094
        %v1100 = vadd.f32 %v1062, %v1096
        %s1101 = sld [smem:[#allocation7 + $0x34]]
        %v1102 = vstv %s1101
        %v1103 = vmul.f32 %v857, %v1102
        %v1104 = vmul.f32 %v858, %v1102
        %v1105 = vmul.f32 %v859, %v1102
        %v1109 = vrot.slane %v1103, 2
        %v1110 = vrot.slane %v1104, 2
        %v1111 = vsel %vm437, %v1109, %v1110
        %v1112 = vrot.slane %v1105, 2
        %v1113 = vsel %vm437, %v1110, %v1112
        %1114 = vrot.lane.b32.xlu0 %v1111, 127
        %v1115 = vpop.permute.xlu0 %1114
        %1116 = vrot.lane.b32.xlu0 %v1113, 127
        %v1117 = vpop.permute.xlu0 %1116
        %v1120 = vadd.f32 %v1078, %v1115
        %v1121 = vadd.f32 %v1079, %v1117
        %s1122 = sld [smem:[#allocation7 + $0x2c]]
        %v1123 = vstv %s1122
        %v1124 = vmul.f32 %v857, %v1123
        %v1125 = vmul.f32 %v858, %v1123
        %v1126 = vmul.f32 %v859, %v1123
        %v1130 = vrot.slane %v1124, 2
        %v1131 = vrot.slane %v1125, 2
        %v1132 = vsel %vm437, %v1130, %v1131
        %v1133 = vrot.slane %v1126, 2
        %v1134 = vsel %vm437, %v1131, %v1133
        %1135 = vrot.lane.b32.xlu0 %v1132, 126
        %v1136 = vpop.permute.xlu0 %1135
        %1137 = vrot.lane.b32.xlu0 %v1134, 126
        %v1138 = vpop.permute.xlu0 %1137
        %v1141 = vadd.f32 %v1099, %v1136
        %v1142 = vadd.f32 %v1100, %v1138
        %s1143 = sld [smem:[#allocation7 + $0x35]]
        %v1144 = vstv %s1143
        %v1145 = vmul.f32 %v857, %v1144
        %v1146 = vmul.f32 %v858, %v1144
        %v1147 = vmul.f32 %v859, %v1144
        %v1151 = vrot.slane %v1145, 2
        %v1152 = vrot.slane %v1146, 2
        %v1153 = vsel %vm437, %v1151, %v1152
        %v1154 = vrot.slane %v1147, 2
        %v1155 = vsel %vm437, %v1152, %v1154
        %1156 = vrot.lane.b32.xlu0 %v1153, 126
        %v1157 = vpop.permute.xlu0 %1156
        %1158 = vrot.lane.b32.xlu0 %v1155, 126
        %v1159 = vpop.permute.xlu0 %1158
        %v1162 = vadd.f32 %v1120, %v1157
        %v1163 = vadd.f32 %v1121, %v1159
        %s1164 = scalar_lea.vmem [#allocation2], 72
        %v1165 = vld [vmem:[%s1164] sm:$0xff]
        %v1166 = vld [vmem:[%s1164 + $0x8] sm:$0xff]
        %v1167 = vld [vmem:[%s1164 + $0x10] sm:$0x3]
        %s1168 = sld [smem:[#allocation7 + $0x36]]
        %v1169 = vstv %s1168
        %v1170 = vmul.f32 %v1165, %v1169
        %v1171 = vmul.f32 %v1166, %v1169
        %v1172 = vadd.f32 %v1170, 0.0
        %v1173 = vadd.f32 %v1171, 0.0
        %s1174 = sld [smem:[#allocation7 + $0x3f]]
        %v1175 = vstv %s1174
        %v1176 = vmul.f32 %v1165, %v1175
        %v1177 = vmul.f32 %v1166, %v1175
        %v1178 = vadd.f32 %v1176, 0.0
        %v1179 = vadd.f32 %v1177, 0.0
        %s1180 = sld [smem:[#allocation7 + $0x37]]
        %v1181 = vstv %s1180
        %v1182 = vmul.f32 %v1165, %v1181
        %v1183 = vmul.f32 %v1166, %v1181
        %1186 = vrot.lane.b32.xlu0 %v1182, 127
        %v1187 = vpop.permute.xlu0 %1186
        %1188 = vrot.lane.b32.xlu0 %v1183, 127
        %v1189 = vpop.permute.xlu0 %1188
        %v1192 = vadd.f32 %v1172, %v1187
        %v1193 = vadd.f32 %v1173, %v1189
        %s1194 = sld [smem:[#allocation7 + $0x40]]
        %v1195 = vstv %s1194
        %v1196 = vmul.f32 %v1165, %v1195
        %v1197 = vmul.f32 %v1166, %v1195
        %1200 = vrot.lane.b32.xlu0 %v1196, 127
        %v1201 = vpop.permute.xlu0 %1200
        %1202 = vrot.lane.b32.xlu0 %v1197, 127
        %v1203 = vpop.permute.xlu0 %1202
        %v1206 = vadd.f32 %v1178, %v1201
        %v1207 = vadd.f32 %v1179, %v1203
        %s1208 = sld [smem:[#allocation7 + $0x38]]
        %v1209 = vstv %s1208
        %v1210 = vmul.f32 %v1165, %v1209
        %v1211 = vmul.f32 %v1166, %v1209
        %1214 = vrot.lane.b32.xlu0 %v1210, 126
        %v1215 = vpop.permute.xlu0 %1214
        %1216 = vrot.lane.b32.xlu0 %v1211, 126
        %v1217 = vpop.permute.xlu0 %1216
        %v1220 = vadd.f32 %v1192, %v1215
        %v1221 = vadd.f32 %v1193, %v1217
        %s1222 = sld [smem:[#allocation7 + $0x41]]
        %v1223 = vstv %s1222
        %v1224 = vmul.f32 %v1165, %v1223
        %v1225 = vmul.f32 %v1166, %v1223
        %1228 = vrot.lane.b32.xlu0 %v1224, 126
        %v1229 = vpop.permute.xlu0 %1228
        %1230 = vrot.lane.b32.xlu0 %v1225, 126
        %v1231 = vpop.permute.xlu0 %1230
        %v1234 = vadd.f32 %v1206, %v1229
        %v1235 = vadd.f32 %v1207, %v1231
        %s1236 = sld [smem:[#allocation7 + $0x39]]
        %v1237 = vstv %s1236
        %v1238 = vmul.f32 %v1165, %v1237
        %v1239 = vmul.f32 %v1166, %v1237
        %v1240 = vmul.f32 %v1167, %v1237
        %v1244 = vrot.slane %v1238, 1
        %v1245 = vrot.slane %v1239, 1
        %v1246 = vsel %vm318, %v1244, %v1245
        %v1247 = vrot.slane %v1240, 1
        %v1248 = vsel %vm318, %v1245, %v1247
        %v1251 = vadd.f32 %v1220, %v1246
        %v1252 = vadd.f32 %v1221, %v1248
        %s1253 = sld [smem:[#allocation7 + $0x42]]
        %v1254 = vstv %s1253
        %v1255 = vmul.f32 %v1165, %v1254
        %v1256 = vmul.f32 %v1166, %v1254
        %v1257 = vmul.f32 %v1167, %v1254
        %v1261 = vrot.slane %v1255, 1
        %v1262 = vrot.slane %v1256, 1
        %v1263 = vsel %vm318, %v1261, %v1262
        %v1264 = vrot.slane %v1257, 1
        %v1265 = vsel %vm318, %v1262, %v1264
        %v1268 = vadd.f32 %v1234, %v1263
        %v1269 = vadd.f32 %v1235, %v1265
        %s1270 = sld [smem:[#allocation7 + $0x3a]]
        %v1271 = vstv %s1270
        %v1272 = vmul.f32 %v1165, %v1271
        %v1273 = vmul.f32 %v1166, %v1271
        %v1274 = vmul.f32 %v1167, %v1271
        %v1278 = vrot.slane %v1272, 1
        %v1279 = vrot.slane %v1273, 1
        %v1280 = vsel %vm318, %v1278, %v1279
        %v1281 = vrot.slane %v1274, 1
        %v1282 = vsel %vm318, %v1279, %v1281
        %1283 = vrot.lane.b32.xlu0 %v1280, 127
        %v1284 = vpop.permute.xlu0 %1283
        %1285 = vrot.lane.b32.xlu0 %v1282, 127
        %v1286 = vpop.permute.xlu0 %1285
        %v1289 = vadd.f32 %v1251, %v1284
        %v1290 = vadd.f32 %v1252, %v1286
        %s1291 = sld [smem:[#allocation7 + $0x43]]
        %v1292 = vstv %s1291
        %v1293 = vmul.f32 %v1165, %v1292
        %v1294 = vmul.f32 %v1166, %v1292
        %v1295 = vmul.f32 %v1167, %v1292
        %v1299 = vrot.slane %v1293, 1
        %v1300 = vrot.slane %v1294, 1
        %v1301 = vsel %vm318, %v1299, %v1300
        %v1302 = vrot.slane %v1295, 1
        %v1303 = vsel %vm318, %v1300, %v1302
        %1304 = vrot.lane.b32.xlu0 %v1301, 127
        %v1305 = vpop.permute.xlu0 %1304
        %1306 = vrot.lane.b32.xlu0 %v1303, 127
        %v1307 = vpop.permute.xlu0 %1306
        %v1310 = vadd.f32 %v1268, %v1305
        %v1311 = vadd.f32 %v1269, %v1307
        %s1312 = sld [smem:[#allocation7 + $0x3b]]
        %v1313 = vstv %s1312
        %v1314 = vmul.f32 %v1165, %v1313
        %v1315 = vmul.f32 %v1166, %v1313
        %v1316 = vmul.f32 %v1167, %v1313
        %v1320 = vrot.slane %v1314, 1
        %v1321 = vrot.slane %v1315, 1
        %v1322 = vsel %vm318, %v1320, %v1321
        %v1323 = vrot.slane %v1316, 1
        %v1324 = vsel %vm318, %v1321, %v1323
        %1325 = vrot.lane.b32.xlu0 %v1322, 126
        %v1326 = vpop.permute.xlu0 %1325
        %1327 = vrot.lane.b32.xlu0 %v1324, 126
        %v1328 = vpop.permute.xlu0 %1327
        %v1331 = vadd.f32 %v1289, %v1326
        %v1332 = vadd.f32 %v1290, %v1328
        %s1333 = sld [smem:[#allocation7 + $0x44]]
        %v1334 = vstv %s1333
        %v1335 = vmul.f32 %v1165, %v1334
        %v1336 = vmul.f32 %v1166, %v1334
        %v1337 = vmul.f32 %v1167, %v1334
        %v1341 = vrot.slane %v1335, 1
        %v1342 = vrot.slane %v1336, 1
        %v1343 = vsel %vm318, %v1341, %v1342
        %v1344 = vrot.slane %v1337, 1
        %v1345 = vsel %vm318, %v1342, %v1344
        %1346 = vrot.lane.b32.xlu0 %v1343, 126
        %v1347 = vpop.permute.xlu0 %1346
        %1348 = vrot.lane.b32.xlu0 %v1345, 126
        %v1349 = vpop.permute.xlu0 %1348
        %v1352 = vadd.f32 %v1310, %v1347
        %v1353 = vadd.f32 %v1311, %v1349
        %s1354 = sld [smem:[#allocation7 + $0x3c]]
        %v1355 = vstv %s1354
        %v1356 = vmul.f32 %v1165, %v1355
        %v1357 = vmul.f32 %v1166, %v1355
        %v1358 = vmul.f32 %v1167, %v1355
        %v1362 = vrot.slane %v1356, 2
        %v1363 = vrot.slane %v1357, 2
        %v1364 = vsel %vm437, %v1362, %v1363
        %v1365 = vrot.slane %v1358, 2
        %v1366 = vsel %vm437, %v1363, %v1365
        %v1369 = vadd.f32 %v1331, %v1364
        %v1370 = vadd.f32 %v1332, %v1366
        %s1371 = sld [smem:[#allocation7 + $0x45]]
        %v1372 = vstv %s1371
        %v1373 = vmul.f32 %v1165, %v1372
        %v1374 = vmul.f32 %v1166, %v1372
        %v1375 = vmul.f32 %v1167, %v1372
        %v1379 = vrot.slane %v1373, 2
        %v1380 = vrot.slane %v1374, 2
        %v1381 = vsel %vm437, %v1379, %v1380
        %v1382 = vrot.slane %v1375, 2
        %v1383 = vsel %vm437, %v1380, %v1382
        %v1386 = vadd.f32 %v1352, %v1381
        %v1387 = vadd.f32 %v1353, %v1383
        %s1388 = sld [smem:[#allocation7 + $0x3d]]
        %v1389 = vstv %s1388
        %v1390 = vmul.f32 %v1165, %v1389
        %v1391 = vmul.f32 %v1166, %v1389
        %v1392 = vmul.f32 %v1167, %v1389
        %v1396 = vrot.slane %v1390, 2
        %v1397 = vrot.slane %v1391, 2
        %v1398 = vsel %vm437, %v1396, %v1397
        %v1399 = vrot.slane %v1392, 2
        %v1400 = vsel %vm437, %v1397, %v1399
        %1401 = vrot.lane.b32.xlu0 %v1398, 127
        %v1402 = vpop.permute.xlu0 %1401
        %1403 = vrot.lane.b32.xlu0 %v1400, 127
        %v1404 = vpop.permute.xlu0 %1403
        %v1407 = vadd.f32 %v1369, %v1402
        %v1408 = vadd.f32 %v1370, %v1404
        %s1409 = sld [smem:[#allocation7 + $0x46]]
        %v1410 = vstv %s1409
        %v1411 = vmul.f32 %v1165, %v1410
        %v1412 = vmul.f32 %v1166, %v1410
        %v1413 = vmul.f32 %v1167, %v1410
        %v1417 = vrot.slane %v1411, 2
        %v1418 = vrot.slane %v1412, 2
        %v1419 = vsel %vm437, %v1417, %v1418
        %v1420 = vrot.slane %v1413, 2
        %v1421 = vsel %vm437, %v1418, %v1420
        %1422 = vrot.lane.b32.xlu0 %v1419, 127
        %v1423 = vpop.permute.xlu0 %1422
        %1424 = vrot.lane.b32.xlu0 %v1421, 127
        %v1425 = vpop.permute.xlu0 %1424
        %v1428 = vadd.f32 %v1386, %v1423
        %v1429 = vadd.f32 %v1387, %v1425
        %s1430 = sld [smem:[#allocation7 + $0x3e]]
        %v1431 = vstv %s1430
        %v1432 = vmul.f32 %v1165, %v1431
        %v1433 = vmul.f32 %v1166, %v1431
        %v1434 = vmul.f32 %v1167, %v1431
        %v1438 = vrot.slane %v1432, 2
        %v1439 = vrot.slane %v1433, 2
        %v1440 = vsel %vm437, %v1438, %v1439
        %v1441 = vrot.slane %v1434, 2
        %v1442 = vsel %vm437, %v1439, %v1441
        %1443 = vrot.lane.b32.xlu0 %v1440, 126
        %v1444 = vpop.permute.xlu0 %1443
        %1445 = vrot.lane.b32.xlu0 %v1442, 126
        %v1446 = vpop.permute.xlu0 %1445
        %v1449 = vadd.f32 %v1407, %v1444
        %v1450 = vadd.f32 %v1408, %v1446
        %s1451 = sld [smem:[#allocation7 + $0x47]]
        %v1452 = vstv %s1451
        %v1453 = vmul.f32 %v1165, %v1452
        %v1454 = vmul.f32 %v1166, %v1452
        %v1455 = vmul.f32 %v1167, %v1452
        %v1459 = vrot.slane %v1453, 2
        %v1460 = vrot.slane %v1454, 2
        %v1461 = vsel %vm437, %v1459, %v1460
        %v1462 = vrot.slane %v1455, 2
        %v1463 = vsel %vm437, %v1460, %v1462
        %1464 = vrot.lane.b32.xlu0 %v1461, 126
        %v1465 = vpop.permute.xlu0 %1464
        %1466 = vrot.lane.b32.xlu0 %v1463, 126
        %v1467 = vpop.permute.xlu0 %1466
        %v1470 = vadd.f32 %v1428, %v1465
        %v1471 = vadd.f32 %v1429, %v1467
        %vm1472 = vcmask 146432
        %1473 = vst.msk [vmem:[%s175] sm:$0xff] %vm1472, %v525
        %1474 = vst.msk [vmem:[%s175 + $0x8] sm:$0xff] %vm1472, %v526
        %1475 = vst.msk [vmem:[%s175 + $0x10] sm:$0xff] %vm1472, %v546
        %1476 = vst.msk [vmem:[%s175 + $0x18] sm:$0xff] %vm1472, %v547
        %1477 = vst.msk [vmem:[%s175 + $0x20] sm:$0xff] %vm1472, %v833
        %1478 = vst.msk [vmem:[%s175 + $0x28] sm:$0xff] %vm1472, %v834
        %1479 = vst.msk [vmem:[%s175 + $0x30] sm:$0xff] %vm1472, %v854
        %1480 = vst.msk [vmem:[%s175 + $0x38] sm:$0xff] %vm1472, %v855
        %1481 = vst.msk [vmem:[%s175 + $0x40] sm:$0xff] %vm1472, %v1141
        %1482 = vst.msk [vmem:[%s175 + $0x48] sm:$0xff] %vm1472, %v1142
        %1483 = vst.msk [vmem:[%s175 + $0x50] sm:$0xff] %vm1472, %v1162
        %1484 = vst.msk [vmem:[%s175 + $0x58] sm:$0xff] %vm1472, %v1163
        %1485 = vst.msk [vmem:[%s175 + $0x60] sm:$0xff] %vm1472, %v1449
        %1486 = vst.msk [vmem:[%s175 + $0x68] sm:$0xff] %vm1472, %v1450
        %1487 = vst.msk [vmem:[%s175 + $0x70] sm:$0xff] %vm1472, %v1470
        %1488 = vst.msk [vmem:[%s175 + $0x78] sm:$0xff] %vm1472, %v1471
        %s1489 = sand.u32 %s75, 1
        %s1490 = scalar_lea.sflag [#allocation5], %s1489
        %s1491 = sand.u32 %s75, 1
        %s1492 = smul.addr %s1491, 128
        %s1493 = scalar_lea.vmem [#allocation8], %s1492
        // Predicated region
        $region37: #{tpu_custom_call.1} parent=27 // pred_check
          %p1494 = pneg %p85
        $region38: #{tpu_custom_call.1} parent=27 // pred_check_branch
          %1496 = sbr.rel (%p1494) target = $region40
        $region39: #{tpu_custom_call.1} parent=27 // pred_region
          %s1498 = ssub.s32 2048, 2048
          %1499 = vsyncadd %s1490, %s1498
          %s1500 = smul.addr %s20, 16
          %s1501 = smul.addr %s1500, 128
          %s1502 = scalar_lea.hbm %s2, %s1501
          %s1503 = sshll.u32 %s1493, 4
          %s1504 = int_to_ptr.vmem [resolvable:$true] %s1503
          %1509 = dma.vmem_to_hbm [thread:$0]  %s1504, 2048, %s1502, %s1490, 128, 128, 8
        $region40: #{tpu_custom_call.1} parent=27 // pred_fallthru
          _
      $region28: #{tpu_custom_call.1} parent=5 // pred_fallthru
        _
      %p1510 = scmp.le.s32.totalorder 2, %s15
      // Predicated region
      $region41: #{tpu_custom_call.1} parent=5 // pred_check
        %p1511 = pneg %p1510
      $region42: #{tpu_custom_call.1} parent=5 // pred_check_branch
        %1513 = sbr.rel (%p1511) target = $region44
      $region43: #{tpu_custom_call.1} parent=5 // pred_region
        %s1514 = ssub.s32 %s15, 2
        // Predicated region
        $region45: #{tpu_custom_call.1} parent=43 // pred_check
          %p1515 = pneg %p91
        $region46: #{tpu_custom_call.1} parent=43 // pred_check_branch
          %1517 = sbr.rel (%p1515) target = $region48
        $region47: #{tpu_custom_call.1} parent=43 // pred_region
          %s1518 = sand.u32 %s76, 1
          %s1519 = scalar_lea.sflag [#allocation5], %s1518
          %s1520 = sand.u32 %s76, 1
          %s1521 = smul.addr %s1520, 128
          %s1522 = scalar_lea.vmem [#allocation8], %s1521
          %1523 = dma.done %s1519, 2048
        $region48: #{tpu_custom_call.1} parent=43 // pred_fallthru
          _
      $region44: #{tpu_custom_call.1} parent=5 // pred_fallthru
        _
    $region6: #{tpu_custom_call.1} parent=1 // loop_footer
      %s19 = sadd.s32 1, %s15
    $region7: #{tpu_custom_call.1} parent=1 // loop_footer_branch
      %14 = sbr.rel target = $region3
    $region8: #{tpu_custom_call.1} parent=1 // loop_exit
      _
    %1524 = vsyncpa [#allocation4], 1
    %s1525 = scalar_lea.sflag [#allocation4], 1
    %1526 = vsyncpa %s1525, 1
    %1527 = vsyncpa [#allocation5], 1
    %s1528 = scalar_lea.sflag [#allocation5], 1
    %1529 = vsyncpa %s1528, 1
    %1530 = vsyncpa [#allocation6], 1
    %s1531 = scalar_lea.sflag [#allocation6], 1
    %1532 = vsyncpa %s1531, 1

</llo_original>
